<compile_context>
chip_gen: v7x
topology: tpu7x:2x2x1
jax: 0.10.0
libtpu: 0.0.40
codegen_flags: <defaults>
</compile_context>

<pallas_src>
import math
import functools

import jax
import jax.numpy as jnp
from jax.experimental import pallas as pl
from jax.experimental.pallas import tpu as pltpu


# ----------------------------- Pallas kernel ---------------------------------

def _mha_kernel(x_ref, mask_ref,
                wq_ref, bq_ref, wk_ref, bk_ref, wv_ref, bv_ref,
                wo_ref, bo_ref,
                o_ref, *, n_heads, dim_per_head):
    # x_ref   : (B_TILE, qlen, dim)  float32
    # mask_ref: (B_TILE, 1, klen)    float32 (non-zero == attend)
    # w*_ref  : (dim, dim)           bfloat16, already transposed to (in, out)
    # b*_ref  : (1, dim)             float32
    # o_ref   : (B_TILE, qlen, dim)  float32
    B, Q, D = x_ref.shape
    M = B * Q

    # Fold batch into the matmul M dimension; bf16 operands feed the MXU,
    # accumulation is f32 (preferred_element_type).
    x = x_ref[...].reshape(M, D).astype(jnp.bfloat16)

    q = jnp.dot(x, wq_ref[...], preferred_element_type=jnp.float32) + bq_ref[...]
    k = jnp.dot(x, wk_ref[...], preferred_element_type=jnp.float32) + bk_ref[...]
    v = jnp.dot(x, wv_ref[...], preferred_element_type=jnp.float32) + bv_ref[...]

    # Scale applied once to the full q; mask hoisted once as an additive bias.
    q = q * jnp.float32(1.0 / math.sqrt(dim_per_head))
    bias = jnp.where(mask_ref[...] != 0.0,
                     jnp.float32(0.0), jnp.float32(-jnp.inf))          # (B, 1, klen)

    q3 = q.reshape(B, Q, D).astype(jnp.bfloat16)
    k3 = k.reshape(B, Q, D).astype(jnp.bfloat16)                        # klen == qlen
    v3 = v.reshape(B, Q, D).astype(jnp.bfloat16)

    # Accumulating output projection: no per-head context concat.
    acc = jnp.zeros((M, D), jnp.float32)
    for h in range(n_heads):                                            # small static unroll
        sl = slice(h * dim_per_head, (h + 1) * dim_per_head)
        # Contract the last dims directly -- no explicit transpose of K.
        s = jnp.einsum("bqd,bkd->bqk", q3[:, :, sl], k3[:, :, sl],
                       preferred_element_type=jnp.float32)              # (B, Q, K)
        s = s + bias                                                    # masked_fill_

        m = jnp.max(s, axis=-1, keepdims=True)
        p = jnp.exp(s - m)
        l = jnp.sum(p, axis=-1, keepdims=True)
        w = p * pl.reciprocal(l, approx=True)                           # softmax (f32)

        ctx = jnp.einsum("bqk,bkd->bqd", w.astype(jnp.bfloat16), v3[:, :, sl],
                         preferred_element_type=jnp.float32)            # (B, Q, dph)
        acc = acc + jnp.dot(ctx.reshape(M, dim_per_head).astype(jnp.bfloat16),
                            wo_ref[sl, :], preferred_element_type=jnp.float32)

    out = acc + bo_ref[...]
    o_ref[...] = out.reshape(B, Q, D).astype(o_ref.dtype)


# ------------------------------- wrapper --------------------------------------

def _pick_b_tile(bs, qlen, target_rows=512):
    """Largest divisor of bs such that B_TILE * qlen <= target_rows."""
    best = 1
    for b in range(1, bs + 1):
        if bs % b == 0 and b * qlen <= target_rows:
            best = b
    return best


def multi_head_attention(x, mask, params, n_heads, b_tile=None):
    """x: (bs, qlen, dim) f32, mask: (bs, klen) (non-zero == attend)."""
    bs, qlen, dim = x.shape
    klen = mask.shape[-1]
    assert dim % n_heads == 0
    dph = dim // n_heads

    if b_tile is None:
        b_tile = _pick_b_tile(bs, qlen)
    assert bs % b_tile == 0

    mask3 = mask.astype(jnp.float32).reshape(bs, 1, klen)

    # PyTorch nn.Linear stores W as (out, in); pre-transpose to (in, out) and cast
    # to bf16 for the MXU.  Biases stay f32 (added to f32 accumulators).
    wq_t = params["wq"].T.astype(jnp.bfloat16)
    wk_t = params["wk"].T.astype(jnp.bfloat16)
    wv_t = params["wv"].T.astype(jnp.bfloat16)
    wo_t = params["wo"].T.astype(jnp.bfloat16)
    bq = params["bq"].reshape(1, dim).astype(jnp.float32)
    bk = params["bk"].reshape(1, dim).astype(jnp.float32)
    bv = params["bv"].reshape(1, dim).astype(jnp.float32)
    bo = params["bo"].reshape(1, dim).astype(jnp.float32)

    kernel = functools.partial(_mha_kernel, n_heads=n_heads, dim_per_head=dph)

    x_spec = pl.BlockSpec((b_tile, qlen, dim), lambda b: (b, 0, 0))
    m_spec = pl.BlockSpec((b_tile, 1, klen), lambda b: (b, 0, 0))
    w_spec = pl.BlockSpec((dim, dim), lambda b: (0, 0))
    bias_spec = pl.BlockSpec((1, dim), lambda b: (0, 0))

    return pl.pallas_call(
        kernel,
        out_shape=jax.ShapeDtypeStruct((bs, qlen, dim), x.dtype),
        grid=(bs // b_tile,),
        in_specs=[x_spec, m_spec,
                  w_spec, bias_spec, w_spec, bias_spec,
                  w_spec, bias_spec, w_spec, bias_spec],
        out_specs=pl.BlockSpec((b_tile, qlen, dim), lambda b: (b, 0, 0)),
        compiler_params=pltpu.CompilerParams(
            dimension_semantics=("parallel",)),   # batch tiles are independent
    )(x, mask3, wq_t, bq, wk_t, bk, wv_t, bv, wo_t, bo)


# --------------------------- pure-JAX reference --------------------------------

def mha_reference(x, mask, params, n_heads):
    bs, qlen, dim = x.shape
    dph = dim // n_heads

    def lin(t, w, b):
        return t @ w.T + b

    def shape(t):
        return t.reshape(bs, qlen, n_heads, dph).transpose(0, 2, 1, 3)

    q = shape(lin(x, params["wq"], params["bq"])) / math.sqrt(dph)
    k = shape(lin(x, params["wk"], params["bk"]))
    v = shape(lin(x, params["wv"], params["bv"]))

    scores = jnp.einsum("bhqd,bhkd->bhqk", q, k)
    keep = (mask != 0).reshape(bs, 1, 1, -1)
    scores = jnp.where(keep, scores, -jnp.inf)
    w = jax.nn.softmax(scores.astype(jnp.float32), axis=-1)
    ctx = jnp.einsum("bhqk,bhkd->bhqd", w, v)
    ctx = ctx.transpose(0, 2, 1, 3).reshape(bs, qlen, dim)
    return lin(ctx, params["wo"], params["bo"])


# --------------------------------- main ----------------------------------------

if __name__ == "__main__":
    bs, qlen, dim, n_heads = 2, 8, 128, 4   # dim multiple of 128 -> lane-dense output
    key = jax.random.PRNGKey(0)
    ks = jax.random.split(key, 10)

    # nn.Linear-style init: uniform(-1/sqrt(in), 1/sqrt(in)) for W and b.
    bound = 1.0 / math.sqrt(dim)
    u = lambda k, shape: jax.random.uniform(k, shape, jnp.float32, -bound, bound)
    params = {
        "wq": u(ks[0], (dim, dim)), "bq": u(ks[1], (dim,)),
        "wk": u(ks[2], (dim, dim)), "bk": u(ks[3], (dim,)),
        "wv": u(ks[4], (dim, dim)), "bv": u(ks[5], (dim,)),
        "wo": u(ks[6], (dim, dim)), "bo": u(ks[7], (dim,)),
    }

    x = jax.random.normal(ks[8], (bs, qlen, dim), jnp.float32)
    # mask: 1 = attend, 0 = masked; mask out the last 2 key positions for batch 1.
    mask = jnp.ones((bs, qlen), jnp.float32).at[1, -2:].set(0.0)

    out = multi_head_attention(x, mask, params, n_heads)
    out = jax.block_until_ready(out)

    ref = jax.block_until_ready(mha_reference(x, mask, params, n_heads))
    assert out.shape == (bs, qlen, dim)
    # bf16 MXU operands (f32 accumulation) -> compare against the f32 reference
    # with a correspondingly looser tolerance.
    assert jnp.allclose(out, ref, atol=2e-2, rtol=2e-2), (
        f"max abs diff {jnp.max(jnp.abs(out - ref))}")

    print("KERNEL_OK")
</pallas_src>

<mosaic_0001>
module attributes {stable_mosaic.version = 11 : i64} {
  func.func @_mha_kernel(%arg0: i32, %arg1: memref<2x8x128xf32, #tpu.memory_space<vmem>>, %arg2: memref<2x1x8xf32, #tpu.memory_space<vmem>>, %arg3: memref<128x128xbf16, #tpu.memory_space<vmem>>, %arg4: memref<1x128xf32, #tpu.memory_space<vmem>>, %arg5: memref<128x128xbf16, #tpu.memory_space<vmem>>, %arg6: memref<1x128xf32, #tpu.memory_space<vmem>>, %arg7: memref<128x128xbf16, #tpu.memory_space<vmem>>, %arg8: memref<1x128xf32, #tpu.memory_space<vmem>>, %arg9: memref<128x128xbf16, #tpu.memory_space<vmem>>, %arg10: memref<1x128xf32, #tpu.memory_space<vmem>>, %arg11: memref<2x8x128xf32, #tpu.memory_space<vmem>>) attributes {dimension_semantics = [#tpu.dimension_semantics<parallel>], iteration_bounds = array<i64: 1>, scalar_prefetch = 0 : i64, scratch_operands = 0 : i64, tpu.core_type = #tpu.core_type<tc>, window_params = [{transform_indices = @transform_0, window_bounds = array<i64: 2, 8, 128>}, {transform_indices = @transform_1, window_bounds = array<i64: 2, 1, 8>}, {pipeline_mode = #tpu.pipeline_mode<synchronous>, transform_indices = @transform_2, window_bounds = array<i64: 128, 128>}, {pipeline_mode = #tpu.pipeline_mode<synchronous>, transform_indices = @transform_3, window_bounds = array<i64: 1, 128>}, {pipeline_mode = #tpu.pipeline_mode<synchronous>, transform_indices = @transform_4, window_bounds = array<i64: 128, 128>}, {pipeline_mode = #tpu.pipeline_mode<synchronous>, transform_indices = @transform_5, window_bounds = array<i64: 1, 128>}, {pipeline_mode = #tpu.pipeline_mode<synchronous>, transform_indices = @transform_6, window_bounds = array<i64: 128, 128>}, {pipeline_mode = #tpu.pipeline_mode<synchronous>, transform_indices = @transform_7, window_bounds = array<i64: 1, 128>}, {pipeline_mode = #tpu.pipeline_mode<synchronous>, transform_indices = @transform_8, window_bounds = array<i64: 128, 128>}, {pipeline_mode = #tpu.pipeline_mode<synchronous>, transform_indices = @transform_9, window_bounds = array<i64: 1, 128>}, {transform_indices = @transform_10, window_bounds = array<i64: 2, 8, 128>}]} {
    %c0 = arith.constant 0 : index
    %c0_0 = arith.constant 0 : index
    %c0_1 = arith.constant 0 : index
    %0 = vector.load %arg1[%c0, %c0_0, %c0_1] : memref<2x8x128xf32, #tpu.memory_space<vmem>>, vector<2x8x128xf32>
    %1 = vector.shape_cast %0 : vector<2x8x128xf32> to vector<16x128xf32>
    %2 = arith.truncf %1 : vector<16x128xf32> to vector<16x128xbf16>
    %c0_2 = arith.constant 0 : index
    %c0_3 = arith.constant 0 : index
    %3 = vector.load %arg3[%c0_2, %c0_3] : memref<128x128xbf16, #tpu.memory_space<vmem>>, vector<128x128xbf16>
    %cst = arith.constant dense<0.000000e+00> : vector<16x128xf32>
    %4 = tpu.matmul %2, %3, %cst {dimension_numbers = #tpu.dot_dimension_numbers<[1], [0], [0], [1], [0, 0, 1, 1], [], []>} : vector<16x128xbf16>, vector<128x128xbf16>, vector<16x128xf32> -> vector<16x128xf32>
    %c0_4 = arith.constant 0 : index
    %c0_5 = arith.constant 0 : index
    %5 = vector.load %arg4[%c0_4, %c0_5] : memref<1x128xf32, #tpu.memory_space<vmem>>, vector<1x128xf32>
    %6 = vector.broadcast %5 : vector<1x128xf32> to vector<16x128xf32>
    %7 = arith.addf %4, %6 : vector<16x128xf32>
    %c0_6 = arith.constant 0 : index
    %c0_7 = arith.constant 0 : index
    %8 = vector.load %arg5[%c0_6, %c0_7] : memref<128x128xbf16, #tpu.memory_space<vmem>>, vector<128x128xbf16>
    %cst_8 = arith.constant dense<0.000000e+00> : vector<16x128xf32>
    %9 = tpu.matmul %2, %8, %cst_8 {dimension_numbers = #tpu.dot_dimension_numbers<[1], [0], [0], [1], [0, 0, 1, 1], [], []>} : vector<16x128xbf16>, vector<128x128xbf16>, vector<16x128xf32> -> vector<16x128xf32>
    %c0_9 = arith.constant 0 : index
    %c0_10 = arith.constant 0 : index
    %10 = vector.load %arg6[%c0_9, %c0_10] : memref<1x128xf32, #tpu.memory_space<vmem>>, vector<1x128xf32>
    %11 = vector.broadcast %10 : vector<1x128xf32> to vector<16x128xf32>
    %12 = arith.addf %9, %11 : vector<16x128xf32>
    %c0_11 = arith.constant 0 : index
    %c0_12 = arith.constant 0 : index
    %13 = vector.load %arg7[%c0_11, %c0_12] : memref<128x128xbf16, #tpu.memory_space<vmem>>, vector<128x128xbf16>
    %cst_13 = arith.constant dense<0.000000e+00> : vector<16x128xf32>
    %14 = tpu.matmul %2, %13, %cst_13 {dimension_numbers = #tpu.dot_dimension_numbers<[1], [0], [0], [1], [0, 0, 1, 1], [], []>} : vector<16x128xbf16>, vector<128x128xbf16>, vector<16x128xf32> -> vector<16x128xf32>
    %c0_14 = arith.constant 0 : index
    %c0_15 = arith.constant 0 : index
    %15 = vector.load %arg8[%c0_14, %c0_15] : memref<1x128xf32, #tpu.memory_space<vmem>>, vector<1x128xf32>
    %16 = vector.broadcast %15 : vector<1x128xf32> to vector<16x128xf32>
    %17 = arith.addf %14, %16 : vector<16x128xf32>
    %cst_16 = arith.constant 0.176776692 : f32
    %18 = vector.broadcast %cst_16 : f32 to vector<16x128xf32>
    %19 = arith.mulf %7, %18 : vector<16x128xf32>
    %c0_17 = arith.constant 0 : index
    %c0_18 = arith.constant 0 : index
    %c0_19 = arith.constant 0 : index
    %20 = vector.load %arg2[%c0_17, %c0_18, %c0_19] : memref<2x1x8xf32, #tpu.memory_space<vmem>>, vector<2x1x8xf32>
    %cst_20 = arith.constant 0.000000e+00 : f32
    %21 = vector.broadcast %cst_20 : f32 to vector<2x1x8xf32>
    %22 = arith.cmpf one, %20, %21 : vector<2x1x8xf32>
    %cst_21 = arith.constant 0.000000e+00 : f32
    %cst_22 = arith.constant 0xFF800000 : f32
    %23 = vector.broadcast %cst_21 : f32 to vector<2x1x8xf32>
    %24 = vector.broadcast %cst_22 : f32 to vector<2x1x8xf32>
    %25 = arith.select %22, %23, %24 : vector<2x1x8xi1>, vector<2x1x8xf32>
    %26 = vector.shape_cast %19 : vector<16x128xf32> to vector<2x8x128xf32>
    %27 = arith.truncf %26 : vector<2x8x128xf32> to vector<2x8x128xbf16>
    %28 = vector.shape_cast %12 : vector<16x128xf32> to vector<2x8x128xf32>
    %29 = arith.truncf %28 : vector<2x8x128xf32> to vector<2x8x128xbf16>
    %30 = vector.shape_cast %17 : vector<16x128xf32> to vector<2x8x128xf32>
    %31 = arith.truncf %30 : vector<2x8x128xf32> to vector<2x8x128xbf16>
    %cst_23 = arith.constant 0.000000e+00 : f32
    %32 = vector.broadcast %cst_23 : f32 to vector<16x128xf32>
    %33 = vector.extract_strided_slice %27 {offsets = [0, 0, 0], sizes = [2, 8, 32], strides = [1, 1, 1]} : vector<2x8x128xbf16> to vector<2x8x32xbf16>
    %34 = vector.extract_strided_slice %29 {offsets = [0, 0, 0], sizes = [2, 8, 32], strides = [1, 1, 1]} : vector<2x8x128xbf16> to vector<2x8x32xbf16>
    "tpu.trace_start"() <{level = 10 : i32, message = "bqd,bkd->bqk"}> : () -> ()
    %cst_24 = arith.constant dense<0.000000e+00> : vector<2x8x8xf32>
    %35 = tpu.matmul %33, %34, %cst_24 {dimension_numbers = #tpu.dot_dimension_numbers<[2], [2], [1], [1], [0, 0, 0, 1, 1, 1], [0], [0]>} : vector<2x8x32xbf16>, vector<2x8x32xbf16>, vector<2x8x8xf32> -> vector<2x8x8xf32>
    "tpu.trace_stop"() : () -> ()
    %36 = vector.broadcast %25 : vector<2x1x8xf32> to vector<2x8x8xf32>
    %37 = arith.addf %35, %36 : vector<2x8x8xf32>
    %cst_25 = arith.constant dense<0xFF800000> : vector<2x8xf32>
    %38 = vector.multi_reduction <maximumf>, %37, %cst_25 [2] : vector<2x8x8xf32> to vector<2x8xf32>
    %39 = vector.shape_cast %38 : vector<2x8xf32> to vector<2x8x1xf32>
    %40 = vector.broadcast %39 : vector<2x8x1xf32> to vector<2x8x8xf32>
    %41 = arith.subf %37, %40 : vector<2x8x8xf32>
    %42 = math.exp %41 : vector<2x8x8xf32>
    %cst_26 = arith.constant dense<0.000000e+00> : vector<2x8xf32>
    %43 = vector.multi_reduction <add>, %42, %cst_26 [2] : vector<2x8x8xf32> to vector<2x8xf32>
    %44 = vector.shape_cast %43 : vector<2x8xf32> to vector<2x8x1xf32>
    %45 = tpu.reciprocal %44 {approx = true} : vector<2x8x1xf32> -> vector<2x8x1xf32>
    %46 = vector.broadcast %45 : vector<2x8x1xf32> to vector<2x8x8xf32>
    %47 = arith.mulf %42, %46 : vector<2x8x8xf32>
    %48 = arith.truncf %47 : vector<2x8x8xf32> to vector<2x8x8xbf16>
    %49 = vector.extract_strided_slice %31 {offsets = [0, 0, 0], sizes = [2, 8, 32], strides = [1, 1, 1]} : vector<2x8x128xbf16> to vector<2x8x32xbf16>
    "tpu.trace_start"() <{level = 10 : i32, message = "bqk,bkd->bqd"}> : () -> ()
    %cst_27 = arith.constant dense<0.000000e+00> : vector<2x8x32xf32>
    %50 = tpu.matmul %48, %49, %cst_27 {dimension_numbers = #tpu.dot_dimension_numbers<[2], [1], [1], [2], [0, 0, 0, 1, 1, 2], [0], [0]>} : vector<2x8x8xbf16>, vector<2x8x32xbf16>, vector<2x8x32xf32> -> vector<2x8x32xf32>
    "tpu.trace_stop"() : () -> ()
    %51 = vector.shape_cast %50 : vector<2x8x32xf32> to vector<16x32xf32>
    %52 = arith.truncf %51 : vector<16x32xf32> to vector<16x32xbf16>
    %c0_28 = arith.constant 0 : index
    %c0_29 = arith.constant 0 : index
    %53 = vector.load %arg9[%c0_28, %c0_29] : memref<128x128xbf16, #tpu.memory_space<vmem>>, vector<32x128xbf16>
    %cst_30 = arith.constant dense<0.000000e+00> : vector<16x128xf32>
    %54 = tpu.matmul %52, %53, %cst_30 {dimension_numbers = #tpu.dot_dimension_numbers<[1], [0], [0], [1], [0, 0, 1, 1], [], []>} : vector<16x32xbf16>, vector<32x128xbf16>, vector<16x128xf32> -> vector<16x128xf32>
    %55 = arith.addf %32, %54 : vector<16x128xf32>
    %56 = vector.extract_strided_slice %27 {offsets = [0, 0, 32], sizes = [2, 8, 32], strides = [1, 1, 1]} : vector<2x8x128xbf16> to vector<2x8x32xbf16>
    %57 = vector.extract_strided_slice %29 {offsets = [0, 0, 32], sizes = [2, 8, 32], strides = [1, 1, 1]} : vector<2x8x128xbf16> to vector<2x8x32xbf16>
    "tpu.trace_start"() <{level = 10 : i32, message = "bqd,bkd->bqk"}> : () -> ()
    %cst_31 = arith.constant dense<0.000000e+00> : vector<2x8x8xf32>
    %58 = tpu.matmul %56, %57, %cst_31 {dimension_numbers = #tpu.dot_dimension_numbers<[2], [2], [1], [1], [0, 0, 0, 1, 1, 1], [0], [0]>} : vector<2x8x32xbf16>, vector<2x8x32xbf16>, vector<2x8x8xf32> -> vector<2x8x8xf32>
    "tpu.trace_stop"() : () -> ()
    %59 = vector.broadcast %25 : vector<2x1x8xf32> to vector<2x8x8xf32>
    %60 = arith.addf %58, %59 : vector<2x8x8xf32>
    %cst_32 = arith.constant dense<0xFF800000> : vector<2x8xf32>
    %61 = vector.multi_reduction <maximumf>, %60, %cst_32 [2] : vector<2x8x8xf32> to vector<2x8xf32>
    %62 = vector.shape_cast %61 : vector<2x8xf32> to vector<2x8x1xf32>
    %63 = vector.broadcast %62 : vector<2x8x1xf32> to vector<2x8x8xf32>
    %64 = arith.subf %60, %63 : vector<2x8x8xf32>
    %65 = math.exp %64 : vector<2x8x8xf32>
    %cst_33 = arith.constant dense<0.000000e+00> : vector<2x8xf32>
    %66 = vector.multi_reduction <add>, %65, %cst_33 [2] : vector<2x8x8xf32> to vector<2x8xf32>
    %67 = vector.shape_cast %66 : vector<2x8xf32> to vector<2x8x1xf32>
    %68 = tpu.reciprocal %67 {approx = true} : vector<2x8x1xf32> -> vector<2x8x1xf32>
    %69 = vector.broadcast %68 : vector<2x8x1xf32> to vector<2x8x8xf32>
    %70 = arith.mulf %65, %69 : vector<2x8x8xf32>
    %71 = arith.truncf %70 : vector<2x8x8xf32> to vector<2x8x8xbf16>
    %72 = vector.extract_strided_slice %31 {offsets = [0, 0, 32], sizes = [2, 8, 32], strides = [1, 1, 1]} : vector<2x8x128xbf16> to vector<2x8x32xbf16>
    "tpu.trace_start"() <{level = 10 : i32, message = "bqk,bkd->bqd"}> : () -> ()
    %cst_34 = arith.constant dense<0.000000e+00> : vector<2x8x32xf32>
    %73 = tpu.matmul %71, %72, %cst_34 {dimension_numbers = #tpu.dot_dimension_numbers<[2], [1], [1], [2], [0, 0, 0, 1, 1, 2], [0], [0]>} : vector<2x8x8xbf16>, vector<2x8x32xbf16>, vector<2x8x32xf32> -> vector<2x8x32xf32>
    "tpu.trace_stop"() : () -> ()
    %74 = vector.shape_cast %73 : vector<2x8x32xf32> to vector<16x32xf32>
    %75 = arith.truncf %74 : vector<16x32xf32> to vector<16x32xbf16>
    %c32 = arith.constant 32 : index
    %c0_35 = arith.constant 0 : index
    %76 = vector.load %arg9[%c32, %c0_35] : memref<128x128xbf16, #tpu.memory_space<vmem>>, vector<32x128xbf16>
    %cst_36 = arith.constant dense<0.000000e+00> : vector<16x128xf32>
    %77 = tpu.matmul %75, %76, %cst_36 {dimension_numbers = #tpu.dot_dimension_numbers<[1], [0], [0], [1], [0, 0, 1, 1], [], []>} : vector<16x32xbf16>, vector<32x128xbf16>, vector<16x128xf32> -> vector<16x128xf32>
    %78 = arith.addf %55, %77 : vector<16x128xf32>
    %79 = vector.extract_strided_slice %27 {offsets = [0, 0, 64], sizes = [2, 8, 32], strides = [1, 1, 1]} : vector<2x8x128xbf16> to vector<2x8x32xbf16>
    %80 = vector.extract_strided_slice %29 {offsets = [0, 0, 64], sizes = [2, 8, 32], strides = [1, 1, 1]} : vector<2x8x128xbf16> to vector<2x8x32xbf16>
    "tpu.trace_start"() <{level = 10 : i32, message = "bqd,bkd->bqk"}> : () -> ()
    %cst_37 = arith.constant dense<0.000000e+00> : vector<2x8x8xf32>
    %81 = tpu.matmul %79, %80, %cst_37 {dimension_numbers = #tpu.dot_dimension_numbers<[2], [2], [1], [1], [0, 0, 0, 1, 1, 1], [0], [0]>} : vector<2x8x32xbf16>, vector<2x8x32xbf16>, vector<2x8x8xf32> -> vector<2x8x8xf32>
    "tpu.trace_stop"() : () -> ()
    %82 = vector.broadcast %25 : vector<2x1x8xf32> to vector<2x8x8xf32>
    %83 = arith.addf %81, %82 : vector<2x8x8xf32>
    %cst_38 = arith.constant dense<0xFF800000> : vector<2x8xf32>
    %84 = vector.multi_reduction <maximumf>, %83, %cst_38 [2] : vector<2x8x8xf32> to vector<2x8xf32>
    %85 = vector.shape_cast %84 : vector<2x8xf32> to vector<2x8x1xf32>
    %86 = vector.broadcast %85 : vector<2x8x1xf32> to vector<2x8x8xf32>
    %87 = arith.subf %83, %86 : vector<2x8x8xf32>
    %88 = math.exp %87 : vector<2x8x8xf32>
    %cst_39 = arith.constant dense<0.000000e+00> : vector<2x8xf32>
    %89 = vector.multi_reduction <add>, %88, %cst_39 [2] : vector<2x8x8xf32> to vector<2x8xf32>
    %90 = vector.shape_cast %89 : vector<2x8xf32> to vector<2x8x1xf32>
    %91 = tpu.reciprocal %90 {approx = true} : vector<2x8x1xf32> -> vector<2x8x1xf32>
    %92 = vector.broadcast %91 : vector<2x8x1xf32> to vector<2x8x8xf32>
    %93 = arith.mulf %88, %92 : vector<2x8x8xf32>
    %94 = arith.truncf %93 : vector<2x8x8xf32> to vector<2x8x8xbf16>
    %95 = vector.extract_strided_slice %31 {offsets = [0, 0, 64], sizes = [2, 8, 32], strides = [1, 1, 1]} : vector<2x8x128xbf16> to vector<2x8x32xbf16>
    "tpu.trace_start"() <{level = 10 : i32, message = "bqk,bkd->bqd"}> : () -> ()
    %cst_40 = arith.constant dense<0.000000e+00> : vector<2x8x32xf32>
    %96 = tpu.matmul %94, %95, %cst_40 {dimension_numbers = #tpu.dot_dimension_numbers<[2], [1], [1], [2], [0, 0, 0, 1, 1, 2], [0], [0]>} : vector<2x8x8xbf16>, vector<2x8x32xbf16>, vector<2x8x32xf32> -> vector<2x8x32xf32>
    "tpu.trace_stop"() : () -> ()
    %97 = vector.shape_cast %96 : vector<2x8x32xf32> to vector<16x32xf32>
    %98 = arith.truncf %97 : vector<16x32xf32> to vector<16x32xbf16>
    %c64 = arith.constant 64 : index
    %c0_41 = arith.constant 0 : index
    %99 = vector.load %arg9[%c64, %c0_41] : memref<128x128xbf16, #tpu.memory_space<vmem>>, vector<32x128xbf16>
    %cst_42 = arith.constant dense<0.000000e+00> : vector<16x128xf32>
    %100 = tpu.matmul %98, %99, %cst_42 {dimension_numbers = #tpu.dot_dimension_numbers<[1], [0], [0], [1], [0, 0, 1, 1], [], []>} : vector<16x32xbf16>, vector<32x128xbf16>, vector<16x128xf32> -> vector<16x128xf32>
    %101 = arith.addf %78, %100 : vector<16x128xf32>
    %102 = vector.extract_strided_slice %27 {offsets = [0, 0, 96], sizes = [2, 8, 32], strides = [1, 1, 1]} : vector<2x8x128xbf16> to vector<2x8x32xbf16>
    %103 = vector.extract_strided_slice %29 {offsets = [0, 0, 96], sizes = [2, 8, 32], strides = [1, 1, 1]} : vector<2x8x128xbf16> to vector<2x8x32xbf16>
    "tpu.trace_start"() <{level = 10 : i32, message = "bqd,bkd->bqk"}> : () -> ()
    %cst_43 = arith.constant dense<0.000000e+00> : vector<2x8x8xf32>
    %104 = tpu.matmul %102, %103, %cst_43 {dimension_numbers = #tpu.dot_dimension_numbers<[2], [2], [1], [1], [0, 0, 0, 1, 1, 1], [0], [0]>} : vector<2x8x32xbf16>, vector<2x8x32xbf16>, vector<2x8x8xf32> -> vector<2x8x8xf32>
    "tpu.trace_stop"() : () -> ()
    %105 = vector.broadcast %25 : vector<2x1x8xf32> to vector<2x8x8xf32>
    %106 = arith.addf %104, %105 : vector<2x8x8xf32>
    %cst_44 = arith.constant dense<0xFF800000> : vector<2x8xf32>
    %107 = vector.multi_reduction <maximumf>, %106, %cst_44 [2] : vector<2x8x8xf32> to vector<2x8xf32>
    %108 = vector.shape_cast %107 : vector<2x8xf32> to vector<2x8x1xf32>
    %109 = vector.broadcast %108 : vector<2x8x1xf32> to vector<2x8x8xf32>
    %110 = arith.subf %106, %109 : vector<2x8x8xf32>
    %111 = math.exp %110 : vector<2x8x8xf32>
    %cst_45 = arith.constant dense<0.000000e+00> : vector<2x8xf32>
    %112 = vector.multi_reduction <add>, %111, %cst_45 [2] : vector<2x8x8xf32> to vector<2x8xf32>
    %113 = vector.shape_cast %112 : vector<2x8xf32> to vector<2x8x1xf32>
    %114 = tpu.reciprocal %113 {approx = true} : vector<2x8x1xf32> -> vector<2x8x1xf32>
    %115 = vector.broadcast %114 : vector<2x8x1xf32> to vector<2x8x8xf32>
    %116 = arith.mulf %111, %115 : vector<2x8x8xf32>
    %117 = arith.truncf %116 : vector<2x8x8xf32> to vector<2x8x8xbf16>
    %118 = vector.extract_strided_slice %31 {offsets = [0, 0, 96], sizes = [2, 8, 32], strides = [1, 1, 1]} : vector<2x8x128xbf16> to vector<2x8x32xbf16>
    "tpu.trace_start"() <{level = 10 : i32, message = "bqk,bkd->bqd"}> : () -> ()
    %cst_46 = arith.constant dense<0.000000e+00> : vector<2x8x32xf32>
    %119 = tpu.matmul %117, %118, %cst_46 {dimension_numbers = #tpu.dot_dimension_numbers<[2], [1], [1], [2], [0, 0, 0, 1, 1, 2], [0], [0]>} : vector<2x8x8xbf16>, vector<2x8x32xbf16>, vector<2x8x32xf32> -> vector<2x8x32xf32>
    "tpu.trace_stop"() : () -> ()
    %120 = vector.shape_cast %119 : vector<2x8x32xf32> to vector<16x32xf32>
    %121 = arith.truncf %120 : vector<16x32xf32> to vector<16x32xbf16>
    %c96 = arith.constant 96 : index
    %c0_47 = arith.constant 0 : index
    %122 = vector.load %arg9[%c96, %c0_47] : memref<128x128xbf16, #tpu.memory_space<vmem>>, vector<32x128xbf16>
    %cst_48 = arith.constant dense<0.000000e+00> : vector<16x128xf32>
    %123 = tpu.matmul %121, %122, %cst_48 {dimension_numbers = #tpu.dot_dimension_numbers<[1], [0], [0], [1], [0, 0, 1, 1], [], []>} : vector<16x32xbf16>, vector<32x128xbf16>, vector<16x128xf32> -> vector<16x128xf32>
    %124 = arith.addf %101, %123 : vector<16x128xf32>
    %c0_49 = arith.constant 0 : index
    %c0_50 = arith.constant 0 : index
    %125 = vector.load %arg10[%c0_49, %c0_50] : memref<1x128xf32, #tpu.memory_space<vmem>>, vector<1x128xf32>
    %126 = vector.broadcast %125 : vector<1x128xf32> to vector<16x128xf32>
    %127 = arith.addf %124, %126 : vector<16x128xf32>
    %128 = vector.shape_cast %127 : vector<16x128xf32> to vector<2x8x128xf32>
    %c0_51 = arith.constant 0 : index
    %c0_52 = arith.constant 0 : index
    %c0_53 = arith.constant 0 : index
    %129 = vector.load %arg11[%c0_51, %c0_52, %c0_53] : memref<2x8x128xf32, #tpu.memory_space<vmem>>, vector<2x8x128xf32>
    tpu.vector_store %arg11[%c0_51, %c0_52, %c0_53], %128 {strides = array<i32>} : memref<2x8x128xf32, #tpu.memory_space<vmem>>, vector<2x8x128xf32>,
    return
  }
  func.func @transform_0(%arg0: i32) -> (i32, i32, i32) {
    %c0_i32 = arith.constant 0 : i32
    %c0_i32_0 = arith.constant 0 : i32
    %c0_i32_1 = arith.constant 0 : i32
    return %arg0, %c0_i32, %c0_i32_0 : i32, i32, i32
  }
  func.func @transform_1(%arg0: i32) -> (i32, i32, i32) {
    %c0_i32 = arith.constant 0 : i32
    %c0_i32_0 = arith.constant 0 : i32
    %c0_i32_1 = arith.constant 0 : i32
    return %arg0, %c0_i32, %c0_i32_0 : i32, i32, i32
  }
  func.func @transform_2(%arg0: i32) -> (i32, i32) {
    %c0_i32 = arith.constant 0 : i32
    %c0_i32_0 = arith.constant 0 : i32
    %c0_i32_1 = arith.constant 0 : i32
    return %c0_i32, %c0_i32_0 : i32, i32
  }
  func.func @transform_3(%arg0: i32) -> (i32, i32) {
    %c0_i32 = arith.constant 0 : i32
    %c0_i32_0 = arith.constant 0 : i32
    %c0_i32_1 = arith.constant 0 : i32
    return %c0_i32, %c0_i32_0 : i32, i32
  }
  func.func @transform_4(%arg0: i32) -> (i32, i32) {
    %c0_i32 = arith.constant 0 : i32
    %c0_i32_0 = arith.constant 0 : i32
    %c0_i32_1 = arith.constant 0 : i32
    return %c0_i32, %c0_i32_0 : i32, i32
  }
  func.func @transform_5(%arg0: i32) -> (i32, i32) {
    %c0_i32 = arith.constant 0 : i32
    %c0_i32_0 = arith.constant 0 : i32
    %c0_i32_1 = arith.constant 0 : i32
    return %c0_i32, %c0_i32_0 : i32, i32
  }
  func.func @transform_6(%arg0: i32) -> (i32, i32) {
    %c0_i32 = arith.constant 0 : i32
    %c0_i32_0 = arith.constant 0 : i32
    %c0_i32_1 = arith.constant 0 : i32
    return %c0_i32, %c0_i32_0 : i32, i32
  }
  func.func @transform_7(%arg0: i32) -> (i32, i32) {
    %c0_i32 = arith.constant 0 : i32
    %c0_i32_0 = arith.constant 0 : i32
    %c0_i32_1 = arith.constant 0 : i32
    return %c0_i32, %c0_i32_0 : i32, i32
  }
  func.func @transform_8(%arg0: i32) -> (i32, i32) {
    %c0_i32 = arith.constant 0 : i32
    %c0_i32_0 = arith.constant 0 : i32
    %c0_i32_1 = arith.constant 0 : i32
    return %c0_i32, %c0_i32_0 : i32, i32
  }
  func.func @transform_9(%arg0: i32) -> (i32, i32) {
    %c0_i32 = arith.constant 0 : i32
    %c0_i32_0 = arith.constant 0 : i32
    %c0_i32_1 = arith.constant 0 : i32
    return %c0_i32, %c0_i32_0 : i32, i32
  }
  func.func @transform_10(%arg0: i32) -> (i32, i32, i32) {
    %c0_i32 = arith.constant 0 : i32
    %c0_i32_0 = arith.constant 0 : i32
    %c0_i32_1 = arith.constant 0 : i32
    return %arg0, %c0_i32, %c0_i32_0 : i32, i32, i32
  }
}

</mosaic_0001>

<llo_original>
// kernel: tpu_custom_call.1
$region0: #{tpu_custom_call.1}
  #allocation0 [shape = 'u32[]', space=smem, size = 0x4, offset = 0x4, fixed_abs, tag = 'smem constant byte address 0x4 - core index']
  #allocation1 [shape = 'u32[144,128]{1,0:T(1,128)}', space=vmem, size = 0x12000, scoped, tag = 'internal scratch']
  %s0 = inlined_call_operand.hbm [shape: f32[2,8,128], index: 0, kind: input, shape index: {}]
  %s1 = inlined_call_operand.vmem [shape: f32[2,1,8], index: 1, kind: input, shape index: {}]
  %s2 = inlined_call_operand.hbm [shape: bf16[128,128], index: 2, kind: input, shape index: {}]
  %s3 = inlined_call_operand.vmem [shape: f32[1,128], index: 3, kind: input, shape index: {}]
  %s4 = inlined_call_operand.hbm [shape: bf16[128,128], index: 4, kind: input, shape index: {}]
  %s5 = inlined_call_operand.vmem [shape: f32[1,128], index: 5, kind: input, shape index: {}]
  %s6 = inlined_call_operand.hbm [shape: bf16[128,128], index: 6, kind: input, shape index: {}]
  %s7 = inlined_call_operand.vmem [shape: f32[1,128], index: 7, kind: input, shape index: {}]
  %s8 = inlined_call_operand.hbm [shape: bf16[128,128], index: 8, kind: input, shape index: {}]
  %s9 = inlined_call_operand.vmem [shape: f32[1,128], index: 9, kind: input, shape index: {}]
  %s10 = inlined_call_operand.hbm [shape: f32[2,8,128], index: 10, kind: output, shape index: {}]
  %s11 = sld [smem:[#allocation0]]
  $region70: #{tpu_custom_call.1} parent=0
    _
  %s13 = ssub.s32 1, %s11
  %s14 = scalar_select 0, %s13, %s11
  $region1: #{tpu_custom_call.1} parent=0
    #allocation2 [shape = 'u8[8192]{0}', space=vmem, size = 0x2000, scoped, tag = 'input window, operand 0, single buffered']
    #allocation3 [shape = 's32[1]{0}', space=sflag, size = 0x4, scoped, tag = 'scoped memory for tpu_custom_call.1']
    #allocation4 [shape = 's32[1]{0}', space=sflag, size = 0x4, scoped, tag = 'scoped memory for tpu_custom_call.1']
    #allocation5 [shape = 'u8[32768]{0}', space=vmem, size = 0x8000, scoped, tag = 'input window, operand 2, single buffered']
    #allocation6 [shape = 's32[1]{0}', space=sflag, size = 0x4, scoped, tag = 'scoped memory for tpu_custom_call.1']
    #allocation7 [shape = 'u8[32768]{0}', space=vmem, size = 0x8000, scoped, tag = 'input window, operand 4, single buffered']
    #allocation8 [shape = 'u8[32768]{0}', space=vmem, size = 0x8000, scoped, tag = 'input window, operand 6, single buffered']
    #allocation9 [shape = 's32[1]{0}', space=sflag, size = 0x4, scoped, tag = 'scoped memory for tpu_custom_call.1']
    #allocation10 [shape = 'u8[32768]{0}', space=vmem, size = 0x8000, scoped, tag = 'input window, operand 8, single buffered']
    #allocation11 [shape = 'u8[8192]{0}', space=vmem, size = 0x2000, scoped, tag = 'output window, operand 0, single buffered']
    %15 = vsyncpa [#allocation3], 0
    %16 = vsyncpa [#allocation6], 0
    %17 = vsyncpa [#allocation9], 0
    %18 = vsyncpa [#allocation4], 0
    // Predicated region
    $region2: #{tpu_custom_call.1} parent=1 // pred_check
      _
    $region3: #{tpu_custom_call.1} parent=1 // pred_check_branch
      %20 = sbr.rel (0) target = $region5
    $region4: #{tpu_custom_call.1} parent=1 // pred_region
      %s22 = ssub.s32 256, 256
      %23 = vsyncadd [#allocation3], %s22
      %s24 = sshll.u32 [#allocation2], 4
      %s25 = int_to_ptr.vmem [resolvable:$true] %s24
      %30 = dma.hbm_to_vmem [thread:$0]  %s0, 256, %s25, [#allocation3], 128, 128, 8
    $region5: #{tpu_custom_call.1} parent=1 // pred_fallthru
      _
    // Predicated region
    $region6: #{tpu_custom_call.1} parent=1 // pred_check
      _
    $region7: #{tpu_custom_call.1} parent=1 // pred_check_branch
      %32 = sbr.rel (0) target = $region9
    $region8: #{tpu_custom_call.1} parent=1 // pred_region
      _
    $region9: #{tpu_custom_call.1} parent=1 // pred_fallthru
      _
    // Predicated region
    $region10: #{tpu_custom_call.1} parent=1 // pred_check
      _
    $region11: #{tpu_custom_call.1} parent=1 // pred_check_branch
      %34 = sbr.rel (0) target = $region13
    $region12: #{tpu_custom_call.1} parent=1 // pred_region
      %s36 = ssub.s32 1024, 1024
      %37 = vsyncadd [#allocation6], %s36
      %s38 = sshll.u32 [#allocation5], 4
      %s39 = int_to_ptr.vmem [resolvable:$true] %s38
      %44 = dma.hbm_to_vmem [thread:$0]  %s2, 1024, %s39, [#allocation6], 64, 64, 4
    $region13: #{tpu_custom_call.1} parent=1 // pred_fallthru
      _
    // Predicated region
    $region14: #{tpu_custom_call.1} parent=1 // pred_check
      _
    $region15: #{tpu_custom_call.1} parent=1 // pred_check_branch
      %46 = sbr.rel (0) target = $region17
    $region16: #{tpu_custom_call.1} parent=1 // pred_region
      _
    $region17: #{tpu_custom_call.1} parent=1 // pred_fallthru
      _
    // Predicated region
    $region18: #{tpu_custom_call.1} parent=1 // pred_check
      _
    $region19: #{tpu_custom_call.1} parent=1 // pred_check_branch
      %48 = sbr.rel (0) target = $region21
    $region20: #{tpu_custom_call.1} parent=1 // pred_region
      %s50 = ssub.s32 1024, 1024
      %51 = vsyncadd [#allocation6], %s50
      %s52 = sshll.u32 [#allocation7], 4
      %s53 = int_to_ptr.vmem [resolvable:$true] %s52
      %58 = dma.hbm_to_vmem [thread:$0]  %s4, 1024, %s53, [#allocation6], 64, 64, 4
    $region21: #{tpu_custom_call.1} parent=1 // pred_fallthru
      _
    // Predicated region
    $region22: #{tpu_custom_call.1} parent=1 // pred_check
      _
    $region23: #{tpu_custom_call.1} parent=1 // pred_check_branch
      %60 = sbr.rel (0) target = $region25
    $region24: #{tpu_custom_call.1} parent=1 // pred_region
      _
    $region25: #{tpu_custom_call.1} parent=1 // pred_fallthru
      _
    // Predicated region
    $region26: #{tpu_custom_call.1} parent=1 // pred_check
      _
    $region27: #{tpu_custom_call.1} parent=1 // pred_check_branch
      %62 = sbr.rel (0) target = $region29
    $region28: #{tpu_custom_call.1} parent=1 // pred_region
      %s64 = ssub.s32 1024, 1024
      %65 = vsyncadd [#allocation9], %s64
      %s66 = sshll.u32 [#allocation8], 4
      %s67 = int_to_ptr.vmem [resolvable:$true] %s66
      %72 = dma.hbm_to_vmem [thread:$0]  %s6, 1024, %s67, [#allocation9], 64, 64, 4
    $region29: #{tpu_custom_call.1} parent=1 // pred_fallthru
      _
    // Predicated region
    $region30: #{tpu_custom_call.1} parent=1 // pred_check
      _
    $region31: #{tpu_custom_call.1} parent=1 // pred_check_branch
      %74 = sbr.rel (0) target = $region33
    $region32: #{tpu_custom_call.1} parent=1 // pred_region
      _
    $region33: #{tpu_custom_call.1} parent=1 // pred_fallthru
      _
    // Predicated region
    $region34: #{tpu_custom_call.1} parent=1 // pred_check
      _
    $region35: #{tpu_custom_call.1} parent=1 // pred_check_branch
      %76 = sbr.rel (0) target = $region37
    $region36: #{tpu_custom_call.1} parent=1 // pred_region
      %s78 = ssub.s32 1024, 1024
      %79 = vsyncadd [#allocation9], %s78
      %s80 = sshll.u32 [#allocation10], 4
      %s81 = int_to_ptr.vmem [resolvable:$true] %s80
      %86 = dma.hbm_to_vmem [thread:$0]  %s8, 1024, %s81, [#allocation9], 64, 64, 4
    $region37: #{tpu_custom_call.1} parent=1 // pred_fallthru
      _
    // Predicated region
    $region38: #{tpu_custom_call.1} parent=1 // pred_check
      _
    $region39: #{tpu_custom_call.1} parent=1 // pred_check_branch
      %88 = sbr.rel (0) target = $region41
    $region40: #{tpu_custom_call.1} parent=1 // pred_region
      _
    $region41: #{tpu_custom_call.1} parent=1 // pred_fallthru
      _
    // Predicated region
    $region42: #{tpu_custom_call.1} parent=1 // pred_check
      _
    $region43: #{tpu_custom_call.1} parent=1 // pred_check_branch
      %90 = sbr.rel (0) target = $region45
    $region44: #{tpu_custom_call.1} parent=1 // pred_region
      %91 = dma.done [#allocation3], 256
    $region45: #{tpu_custom_call.1} parent=1 // pred_fallthru
      _
    // Predicated region
    $region46: #{tpu_custom_call.1} parent=1 // pred_check
      _
    $region47: #{tpu_custom_call.1} parent=1 // pred_check_branch
      %93 = sbr.rel (0) target = $region49
    $region48: #{tpu_custom_call.1} parent=1 // pred_region
      %94 = dma.done [#allocation6], 1024
    $region49: #{tpu_custom_call.1} parent=1 // pred_fallthru
      _
    // Predicated region
    $region50: #{tpu_custom_call.1} parent=1 // pred_check
      _
    $region51: #{tpu_custom_call.1} parent=1 // pred_check_branch
      %96 = sbr.rel (0) target = $region53
    $region52: #{tpu_custom_call.1} parent=1 // pred_region
      %97 = dma.done [#allocation6], 1024
    $region53: #{tpu_custom_call.1} parent=1 // pred_fallthru
      _
    // Predicated region
    $region54: #{tpu_custom_call.1} parent=1 // pred_check
      _
    $region55: #{tpu_custom_call.1} parent=1 // pred_check_branch
      %99 = sbr.rel (0) target = $region57
    $region56: #{tpu_custom_call.1} parent=1 // pred_region
      %100 = dma.done [#allocation9], 1024
    $region57: #{tpu_custom_call.1} parent=1 // pred_fallthru
      _
    // Predicated region
    $region58: #{tpu_custom_call.1} parent=1 // pred_check
      _
    $region59: #{tpu_custom_call.1} parent=1 // pred_check_branch
      %102 = sbr.rel (0) target = $region61
    $region60: #{tpu_custom_call.1} parent=1 // pred_region
      %103 = dma.done [#allocation9], 1024
    $region61: #{tpu_custom_call.1} parent=1 // pred_fallthru
      _
    %v105 = vld [vmem:[#allocation2] sm:$0xff]
    %v106 = vld [vmem:[#allocation2 + $0x8] sm:$0xff]
    %v107 = vpack.c.bf16 %v106, %v105
    %v108 = vld [vmem:[#allocation5] sm:$0xf]
    %v109 = vld [vmem:[#allocation5 + $0x4] sm:$0xf]
    %v110 = vld [vmem:[#allocation5 + $0x8] sm:$0xf]
    %v111 = vld [vmem:[#allocation5 + $0xc] sm:$0xf]
    %v112 = vld [vmem:[#allocation5 + $0x10] sm:$0xf]
    %v113 = vld [vmem:[#allocation5 + $0x14] sm:$0xf]
    %v114 = vld [vmem:[#allocation5 + $0x18] sm:$0xf]
    %v115 = vld [vmem:[#allocation5 + $0x1c] sm:$0xf]
    %v116 = vld [vmem:[#allocation5 + $0x20] sm:$0xf]
    %v117 = vld [vmem:[#allocation5 + $0x24] sm:$0xf]
    %v118 = vld [vmem:[#allocation5 + $0x28] sm:$0xf]
    %v119 = vld [vmem:[#allocation5 + $0x2c] sm:$0xf]
    %v120 = vld [vmem:[#allocation5 + $0x30] sm:$0xf]
    %v121 = vld [vmem:[#allocation5 + $0x34] sm:$0xf]
    %v122 = vld [vmem:[#allocation5 + $0x38] sm:$0xf]
    %v123 = vld [vmem:[#allocation5 + $0x3c] sm:$0xf]
    %v124 = vld [vmem:[%s3] sm:$0x1]
    %v126 = vlaneseq
    %v127 = vshrl.u32 %v126, 7
    %v128 = vsub.s32 0, %v127
    %v129 = vrot.slane %v124, %v128
    %v147 = vunpack.c.l.b16 %v108
    %v148 = vunpack.c.l.b16 %v109
    %v149 = vunpack.c.l.b16 %v110
    %v150 = vunpack.c.l.b16 %v111
    %v151 = vunpack.c.l.b16 %v112
    %v152 = vunpack.c.l.b16 %v113
    %v153 = vunpack.c.l.b16 %v114
    %v154 = vunpack.c.l.b16 %v115
    %v155 = vunpack.c.l.b16 %v116
    %v156 = vunpack.c.l.b16 %v117
    %v157 = vunpack.c.l.b16 %v118
    %v158 = vunpack.c.l.b16 %v119
    %v159 = vunpack.c.l.b16 %v120
    %v160 = vunpack.c.l.b16 %v121
    %v161 = vunpack.c.l.b16 %v122
    %v162 = vunpack.c.l.b16 %v123
    %v163 = vpack.c.b16 %v148, %v147
    %v164 = vpack.c.b16 %v150, %v149
    %v165 = vpack.c.b16 %v152, %v151
    %v166 = vpack.c.b16 %v154, %v153
    %v167 = vpack.c.b16 %v156, %v155
    %v168 = vpack.c.b16 %v158, %v157
    %v169 = vpack.c.b16 %v160, %v159
    %v170 = vpack.c.b16 %v162, %v161
    %179 = vmatprep.subr.bf16.mxu0 0
    %180 = vmatpush1.bf16.msra.mxu0 %v163
    %181 = vmatprep.subr.bf16.mxu0 0
    %182 = vmatpush1.bf16.msra.mxu0 %v164
    %183 = vmatprep.subr.bf16.mxu0 0
    %184 = vmatpush1.bf16.msra.mxu0 %v165
    %185 = vmatprep.subr.bf16.mxu0 0
    %186 = vmatpush1.bf16.msra.mxu0 %v166
    %187 = vmatprep.subr.bf16.mxu0 0
    %188 = vmatpush1.bf16.msra.mxu0 %v167
    %189 = vmatprep.subr.bf16.mxu0 0
    %190 = vmatpush1.bf16.msra.mxu0 %v168
    %191 = vmatprep.subr.bf16.mxu0 0
    %192 = vmatpush1.bf16.msra.mxu0 %v169
    %193 = vmatprep.subr.bf16.mxu0 0
    %194 = vmatpush1.bf16.msra.mxu0 %v170
    %195 = vmatprep.subr.bf16.mxu0 0
    %196 = vmatpush1.bf16.msra.mxu0 0
    %197 = vmatprep.subr.bf16.mxu0 0
    %198 = vmatpush1.bf16.msra.mxu0 0
    %199 = vmatprep.subr.bf16.mxu0 0
    %200 = vmatpush1.bf16.msra.mxu0 0
    %201 = vmatprep.subr.bf16.mxu0 0
    %202 = vmatpush1.bf16.msra.mxu0 0
    %203 = vmatprep.subr.bf16.mxu0 0
    %204 = vmatpush1.bf16.msra.mxu0 0
    %205 = vmatprep.subr.bf16.mxu0 0
    %206 = vmatpush1.bf16.msra.mxu0 0
    %207 = vmatprep.subr.bf16.mxu0 0
    %208 = vmatpush1.bf16.msra.mxu0 0
    %209 = vmatprep.subr.bf16.mxu0 0
    %210 = vmatpush1.bf16.msra.mxu0 0
    %211 = vmatprep.mubr.bf16.mxu0 0
    %212 = vmatmul.mubr.bf16.gmra.mrb[0].mxu0 %v107
    %v213 = vpop.f32.mrb[0].mxu0
    %v214 = vadd.f32 %v129, %v213
    %v215 = vpop.f32.mrb[0].mxu0
    %v216 = vpop.f32.mrb[0].mxu0
    %v217 = vadd.f32 %v129, %v216
    %v218 = vpop.f32.mrb[0].mxu0
    %219 = vdwg.mxu0
    %v220 = vld [vmem:[#allocation7] sm:$0xf]
    %v221 = vld [vmem:[#allocation7 + $0x4] sm:$0xf]
    %v222 = vld [vmem:[#allocation7 + $0x8] sm:$0xf]
    %v223 = vld [vmem:[#allocation7 + $0xc] sm:$0xf]
    %v224 = vld [vmem:[#allocation7 + $0x10] sm:$0xf]
    %v225 = vld [vmem:[#allocation7 + $0x14] sm:$0xf]
    %v226 = vld [vmem:[#allocation7 + $0x18] sm:$0xf]
    %v227 = vld [vmem:[#allocation7 + $0x1c] sm:$0xf]
    %v228 = vld [vmem:[#allocation7 + $0x20] sm:$0xf]
    %v229 = vld [vmem:[#allocation7 + $0x24] sm:$0xf]
    %v230 = vld [vmem:[#allocation7 + $0x28] sm:$0xf]
    %v231 = vld [vmem:[#allocation7 + $0x2c] sm:$0xf]
    %v232 = vld [vmem:[#allocation7 + $0x30] sm:$0xf]
    %v233 = vld [vmem:[#allocation7 + $0x34] sm:$0xf]
    %v234 = vld [vmem:[#allocation7 + $0x38] sm:$0xf]
    %v235 = vld [vmem:[#allocation7 + $0x3c] sm:$0xf]
    %v236 = vld [vmem:[%s5] sm:$0x1]
    %v238 = vlaneseq
    %v239 = vshrl.u32 %v238, 7
    %v240 = vsub.s32 0, %v239
    %v241 = vrot.slane %v236, %v240
    %v259 = vunpack.c.l.b16 %v220
    %v260 = vunpack.c.l.b16 %v221
    %v261 = vunpack.c.l.b16 %v222
    %v262 = vunpack.c.l.b16 %v223
    %v263 = vunpack.c.l.b16 %v224
    %v264 = vunpack.c.l.b16 %v225
    %v265 = vunpack.c.l.b16 %v226
    %v266 = vunpack.c.l.b16 %v227
    %v267 = vunpack.c.l.b16 %v228
    %v268 = vunpack.c.l.b16 %v229
    %v269 = vunpack.c.l.b16 %v230
    %v270 = vunpack.c.l.b16 %v231
    %v271 = vunpack.c.l.b16 %v232
    %v272 = vunpack.c.l.b16 %v233
    %v273 = vunpack.c.l.b16 %v234
    %v274 = vunpack.c.l.b16 %v235
    %v275 = vpack.c.b16 %v260, %v259
    %v276 = vpack.c.b16 %v262, %v261
    %v277 = vpack.c.b16 %v264, %v263
    %v278 = vpack.c.b16 %v266, %v265
    %v279 = vpack.c.b16 %v268, %v267
    %v280 = vpack.c.b16 %v270, %v269
    %v281 = vpack.c.b16 %v272, %v271
    %v282 = vpack.c.b16 %v274, %v273
    %291 = vmatprep.subr.bf16.mxu0 0
    %292 = vmatpush1.bf16.msra.mxu0 %v275
    %293 = vmatprep.subr.bf16.mxu0 0
    %294 = vmatpush1.bf16.msra.mxu0 %v276
    %295 = vmatprep.subr.bf16.mxu0 0
    %296 = vmatpush1.bf16.msra.mxu0 %v277
    %297 = vmatprep.subr.bf16.mxu0 0
    %298 = vmatpush1.bf16.msra.mxu0 %v278
    %299 = vmatprep.subr.bf16.mxu0 0
    %300 = vmatpush1.bf16.msra.mxu0 %v279
    %301 = vmatprep.subr.bf16.mxu0 0
    %302 = vmatpush1.bf16.msra.mxu0 %v280
    %303 = vmatprep.subr.bf16.mxu0 0
    %304 = vmatpush1.bf16.msra.mxu0 %v281
    %305 = vmatprep.subr.bf16.mxu0 0
    %306 = vmatpush1.bf16.msra.mxu0 %v282
    %307 = vmatprep.subr.bf16.mxu0 0
    %308 = vmatpush1.bf16.msra.mxu0 0
    %309 = vmatprep.subr.bf16.mxu0 0
    %310 = vmatpush1.bf16.msra.mxu0 0
    %311 = vmatprep.subr.bf16.mxu0 0
    %312 = vmatpush1.bf16.msra.mxu0 0
    %313 = vmatprep.subr.bf16.mxu0 0
    %314 = vmatpush1.bf16.msra.mxu0 0
    %315 = vmatprep.subr.bf16.mxu0 0
    %316 = vmatpush1.bf16.msra.mxu0 0
    %317 = vmatprep.subr.bf16.mxu0 0
    %318 = vmatpush1.bf16.msra.mxu0 0
    %319 = vmatprep.subr.bf16.mxu0 0
    %320 = vmatpush1.bf16.msra.mxu0 0
    %321 = vmatprep.subr.bf16.mxu0 0
    %322 = vmatpush1.bf16.msra.mxu0 0
    %323 = vmatprep.mubr.bf16.mxu0 0
    %324 = vmatmul.mubr.bf16.gmra.mrb[0].mxu0 %v107
    %v325 = vpop.f32.mrb[0].mxu0
    %v326 = vadd.f32 %v241, %v325
    %v327 = vpop.f32.mrb[0].mxu0
    %v328 = vpop.f32.mrb[0].mxu0
    %v329 = vadd.f32 %v241, %v328
    %v330 = vpop.f32.mrb[0].mxu0
    %331 = vdwg.mxu0
    %v332 = vld [vmem:[#allocation8] sm:$0xf]
    %v333 = vld [vmem:[#allocation8 + $0x4] sm:$0xf]
    %v334 = vld [vmem:[#allocation8 + $0x8] sm:$0xf]
    %v335 = vld [vmem:[#allocation8 + $0xc] sm:$0xf]
    %v336 = vld [vmem:[#allocation8 + $0x10] sm:$0xf]
    %v337 = vld [vmem:[#allocation8 + $0x14] sm:$0xf]
    %v338 = vld [vmem:[#allocation8 + $0x18] sm:$0xf]
    %v339 = vld [vmem:[#allocation8 + $0x1c] sm:$0xf]
    %v340 = vld [vmem:[#allocation8 + $0x20] sm:$0xf]
    %v341 = vld [vmem:[#allocation8 + $0x24] sm:$0xf]
    %v342 = vld [vmem:[#allocation8 + $0x28] sm:$0xf]
    %v343 = vld [vmem:[#allocation8 + $0x2c] sm:$0xf]
    %v344 = vld [vmem:[#allocation8 + $0x30] sm:$0xf]
    %v345 = vld [vmem:[#allocation8 + $0x34] sm:$0xf]
    %v346 = vld [vmem:[#allocation8 + $0x38] sm:$0xf]
    %v347 = vld [vmem:[#allocation8 + $0x3c] sm:$0xf]
    %v348 = vld [vmem:[%s7] sm:$0x1]
    %v350 = vlaneseq
    %v351 = vshrl.u32 %v350, 7
    %v352 = vsub.s32 0, %v351
    %v353 = vrot.slane %v348, %v352
    %v371 = vunpack.c.l.b16 %v332
    %v372 = vunpack.c.l.b16 %v333
    %v373 = vunpack.c.l.b16 %v334
    %v374 = vunpack.c.l.b16 %v335
    %v375 = vunpack.c.l.b16 %v336
    %v376 = vunpack.c.l.b16 %v337
    %v377 = vunpack.c.l.b16 %v338
    %v378 = vunpack.c.l.b16 %v339
    %v379 = vunpack.c.l.b16 %v340
    %v380 = vunpack.c.l.b16 %v341
    %v381 = vunpack.c.l.b16 %v342
    %v382 = vunpack.c.l.b16 %v343
    %v383 = vunpack.c.l.b16 %v344
    %v384 = vunpack.c.l.b16 %v345
    %v385 = vunpack.c.l.b16 %v346
    %v386 = vunpack.c.l.b16 %v347
    %v387 = vpack.c.b16 %v372, %v371
    %v388 = vpack.c.b16 %v374, %v373
    %v389 = vpack.c.b16 %v376, %v375
    %v390 = vpack.c.b16 %v378, %v377
    %v391 = vpack.c.b16 %v380, %v379
    %v392 = vpack.c.b16 %v382, %v381
    %v393 = vpack.c.b16 %v384, %v383
    %v394 = vpack.c.b16 %v386, %v385
    %403 = vmatprep.subr.bf16.mxu0 0
    %404 = vmatpush1.bf16.msra.mxu0 %v387
    %405 = vmatprep.subr.bf16.mxu0 0
    %406 = vmatpush1.bf16.msra.mxu0 %v388
    %407 = vmatprep.subr.bf16.mxu0 0
    %408 = vmatpush1.bf16.msra.mxu0 %v389
    %409 = vmatprep.subr.bf16.mxu0 0
    %410 = vmatpush1.bf16.msra.mxu0 %v390
    %411 = vmatprep.subr.bf16.mxu0 0
    %412 = vmatpush1.bf16.msra.mxu0 %v391
    %413 = vmatprep.subr.bf16.mxu0 0
    %414 = vmatpush1.bf16.msra.mxu0 %v392
    %415 = vmatprep.subr.bf16.mxu0 0
    %416 = vmatpush1.bf16.msra.mxu0 %v393
    %417 = vmatprep.subr.bf16.mxu0 0
    %418 = vmatpush1.bf16.msra.mxu0 %v394
    %419 = vmatprep.subr.bf16.mxu0 0
    %420 = vmatpush1.bf16.msra.mxu0 0
    %421 = vmatprep.subr.bf16.mxu0 0
    %422 = vmatpush1.bf16.msra.mxu0 0
    %423 = vmatprep.subr.bf16.mxu0 0
    %424 = vmatpush1.bf16.msra.mxu0 0
    %425 = vmatprep.subr.bf16.mxu0 0
    %426 = vmatpush1.bf16.msra.mxu0 0
    %427 = vmatprep.subr.bf16.mxu0 0
    %428 = vmatpush1.bf16.msra.mxu0 0
    %429 = vmatprep.subr.bf16.mxu0 0
    %430 = vmatpush1.bf16.msra.mxu0 0
    %431 = vmatprep.subr.bf16.mxu0 0
    %432 = vmatpush1.bf16.msra.mxu0 0
    %433 = vmatprep.subr.bf16.mxu0 0
    %434 = vmatpush1.bf16.msra.mxu0 0
    %435 = vmatprep.mubr.bf16.mxu0 0
    %436 = vmatmul.mubr.bf16.gmra.mrb[0].mxu0 %v107
    %v437 = vpop.f32.mrb[0].mxu0
    %v438 = vadd.f32 %v353, %v437
    %v439 = vpop.f32.mrb[0].mxu0
    %v440 = vpop.f32.mrb[0].mxu0
    %v441 = vadd.f32 %v353, %v440
    %v442 = vpop.f32.mrb[0].mxu0
    %443 = vdwg.mxu0
    %v444 = vmul.f32 %v214, 0.17677669
    %v445 = vmul.f32 %v217, 0.17677669
    %v446 = vld [vmem:[%s1] sm:$0x1]
    %v447 = vld [vmem:[%s1 + $0x1] sm:$0x1]
    %vm448 = vcmp.ne.f32.partialorder %v446, 0.0
    %vm449 = vcmp.ne.f32.partialorder %v447, 0.0
    %v450 = vsel %vm448, 0.0, -inf
    %v451 = vsel %vm449, 0.0, -inf
    %v452 = vpack.c.bf16 %v444, %v444
    %v453 = vpack.c.bf16 %v445, %v445
    %v454 = vpack.c.bf16 %v326, %v326
    %v455 = vpack.c.bf16 %v329, %v329
    %v456 = vpack.c.bf16 %v438, %v438
    %v457 = vpack.c.bf16 %v441, %v441
    %v460 = vlaneseq
    %v461 = vshrl.u32 %v460, 7
    %v462 = vsub.s32 0, %v461
    %v463 = vrot.slane %v450, %v462
    %v464 = vlaneseq
    %v465 = vshrl.u32 %v464, 7
    %v466 = vsub.s32 0, %v465
    %v467 = vrot.slane %v451, %v466
    %vm470 = vcmask 261120
    %v472 = vsel %vm470, %v452, 0
    %v475 = vsel %vm470, %v454, 0
    %477 = vmatprep.subr.bf16.mxu0 0
    %478 = vmatpush1.bf16.xpose.msra.mxu0 %v475
    %479 = vmatprep.subr.bf16.mxu0 0
    %480 = vmatpush1.bf16.xpose.msra.mxu0 0
    %481 = vmatprep.subr.bf16.mxu0 0
    %482 = vmatpush1.bf16.xpose.msra.mxu0 0
    %483 = vmatprep.subr.bf16.mxu0 0
    %484 = vmatpush1.bf16.xpose.msra.mxu0 0
    %485 = vmatprep.subr.bf16.mxu0 0
    %486 = vmatpush1.bf16.xpose.msra.mxu0 0
    %487 = vmatprep.subr.bf16.mxu0 0
    %488 = vmatpush1.bf16.xpose.msra.mxu0 0
    %489 = vmatprep.subr.bf16.mxu0 0
    %490 = vmatpush1.bf16.xpose.msra.mxu0 0
    %491 = vmatprep.subr.bf16.mxu0 0
    %492 = vmatpush1.bf16.xpose.msra.mxu0 0
    %493 = vmatprep.subr.bf16.mxu0 0
    %494 = vmatpush1.bf16.xpose.msra.mxu0 0
    %495 = vmatprep.subr.bf16.mxu0 0
    %496 = vmatpush1.bf16.xpose.msra.mxu0 0
    %497 = vmatprep.subr.bf16.mxu0 0
    %498 = vmatpush1.bf16.xpose.msra.mxu0 0
    %499 = vmatprep.subr.bf16.mxu0 0
    %500 = vmatpush1.bf16.xpose.msra.mxu0 0
    %501 = vmatprep.subr.bf16.mxu0 0
    %502 = vmatpush1.bf16.xpose.msra.mxu0 0
    %503 = vmatprep.subr.bf16.mxu0 0
    %504 = vmatpush1.bf16.xpose.msra.mxu0 0
    %505 = vmatprep.subr.bf16.mxu0 0
    %506 = vmatpush1.bf16.xpose.msra.mxu0 0
    %507 = vmatprep.subr.bf16.mxu0 0
    %508 = vmatpush1.bf16.xpose.msra.mxu0 0
    %509 = vmatprep.mubr.bf16.mxu0 0
    %510 = vmatmul.mubr.bf16.gmra.mrb[0].mxu0 %v472
    %v511 = vpop.f32.mrb[0].mxu0
    %v512 = vadd.f32 %v463, %v511
    %v513 = vpop.f32.mrb[0].mxu0
    %v514 = vpop.f32.mrb[0].mxu0
    %v515 = vpop.f32.mrb[0].mxu0
    %516 = vdwg.mxu0
    %v518 = vsel %vm470, %v453, 0
    %v521 = vsel %vm470, %v455, 0
    %523 = vmatprep.subr.bf16.mxu0 0
    %524 = vmatpush1.bf16.xpose.msra.mxu0 %v521
    %525 = vmatprep.subr.bf16.mxu0 0
    %526 = vmatpush1.bf16.xpose.msra.mxu0 0
    %527 = vmatprep.subr.bf16.mxu0 0
    %528 = vmatpush1.bf16.xpose.msra.mxu0 0
    %529 = vmatprep.subr.bf16.mxu0 0
    %530 = vmatpush1.bf16.xpose.msra.mxu0 0
    %531 = vmatprep.subr.bf16.mxu0 0
    %532 = vmatpush1.bf16.xpose.msra.mxu0 0
    %533 = vmatprep.subr.bf16.mxu0 0
    %534 = vmatpush1.bf16.xpose.msra.mxu0 0
    %535 = vmatprep.subr.bf16.mxu0 0
    %536 = vmatpush1.bf16.xpose.msra.mxu0 0
    %537 = vmatprep.subr.bf16.mxu0 0
    %538 = vmatpush1.bf16.xpose.msra.mxu0 0
    %539 = vmatprep.subr.bf16.mxu0 0
    %540 = vmatpush1.bf16.xpose.msra.mxu0 0
    %541 = vmatprep.subr.bf16.mxu0 0
    %542 = vmatpush1.bf16.xpose.msra.mxu0 0
    %543 = vmatprep.subr.bf16.mxu0 0
    %544 = vmatpush1.bf16.xpose.msra.mxu0 0
    %545 = vmatprep.subr.bf16.mxu0 0
    %546 = vmatpush1.bf16.xpose.msra.mxu0 0
    %547 = vmatprep.subr.bf16.mxu0 0
    %548 = vmatpush1.bf16.xpose.msra.mxu0 0
    %549 = vmatprep.subr.bf16.mxu0 0
    %550 = vmatpush1.bf16.xpose.msra.mxu0 0
    %551 = vmatprep.subr.bf16.mxu0 0
    %552 = vmatpush1.bf16.xpose.msra.mxu0 0
    %553 = vmatprep.subr.bf16.mxu0 0
    %554 = vmatpush1.bf16.xpose.msra.mxu0 0
    %555 = vmatprep.mubr.bf16.mxu0 0
    %556 = vmatmul.mubr.bf16.gmra.mrb[0].mxu0 %v518
    %v557 = vpop.f32.mrb[0].mxu0
    %v558 = vadd.f32 %v467, %v557
    %v559 = vpop.f32.mrb[0].mxu0
    %v560 = vpop.f32.mrb[0].mxu0
    %v561 = vpop.f32.mrb[0].mxu0
    %562 = vdwg.mxu0
    %vm563 = vcmask 64512
    %v564 = vsel %vm563, %v512, -inf
    %565 = vmax.xlane.f32.xlu0 %v564
    %v566 = vpop.xlane.xlu0 %565
    %v567 = vsel %vm563, %v558, -inf
    %568 = vmax.xlane.f32.xlu0 %v567
    %v569 = vpop.xlane.xlu0 %568
    %v570 = vsub.f32 %v512, %v566
    %v571 = vsub.f32 %v558, %v569
    %v572 = vmul.f32 %v570, 1.442695
    %v573 = vpow.pop %v572
    %v574 = vmul.f32 %v571, 1.442695
    %v575 = vpow.pop %v574
    %v576 = vsel %vm563, %v573, 0.0
    %577 = vadd.xlane.f32.xlu0 %v576
    %v578 = vpop.xlane.xlu0 %577
    %v579 = vsel %vm563, %v575, 0.0
    %580 = vadd.xlane.f32.xlu0 %v579
    %v581 = vpop.xlane.xlu0 %580
    %v582 = vrcp.pop %v578
    %v583 = vrcp.pop %v581
    %v584 = vmul.f32 %v573, %v582
    %v585 = vmul.f32 %v575, %v583
    %v586 = vpack.c.bf16 %v584, %v584
    %v587 = vpack.c.bf16 %v585, %v585
    %v589 = vsel %vm563, %v586, 0
    %vm591 = vcmask 1043456
    %v593 = vsel %vm591, %v456, 0
    %595 = vmatprep.subr.bf16.mxu0 0
    %596 = vmatpush1.bf16.msra.mxu0 %v593
    %597 = vmatprep.subr.bf16.mxu0 0
    %598 = vmatpush1.bf16.msra.mxu0 0
    %599 = vmatprep.subr.bf16.mxu0 0
    %600 = vmatpush1.bf16.msra.mxu0 0
    %601 = vmatprep.subr.bf16.mxu0 0
    %602 = vmatpush1.bf16.msra.mxu0 0
    %603 = vmatprep.subr.bf16.mxu0 0
    %604 = vmatpush1.bf16.msra.mxu0 0
    %605 = vmatprep.subr.bf16.mxu0 0
    %606 = vmatpush1.bf16.msra.mxu0 0
    %607 = vmatprep.subr.bf16.mxu0 0
    %608 = vmatpush1.bf16.msra.mxu0 0
    %609 = vmatprep.subr.bf16.mxu0 0
    %610 = vmatpush1.bf16.msra.mxu0 0
    %611 = vmatprep.subr.bf16.mxu0 0
    %612 = vmatpush1.bf16.msra.mxu0 0
    %613 = vmatprep.subr.bf16.mxu0 0
    %614 = vmatpush1.bf16.msra.mxu0 0
    %615 = vmatprep.subr.bf16.mxu0 0
    %616 = vmatpush1.bf16.msra.mxu0 0
    %617 = vmatprep.subr.bf16.mxu0 0
    %618 = vmatpush1.bf16.msra.mxu0 0
    %619 = vmatprep.subr.bf16.mxu0 0
    %620 = vmatpush1.bf16.msra.mxu0 0
    %621 = vmatprep.subr.bf16.mxu0 0
    %622 = vmatpush1.bf16.msra.mxu0 0
    %623 = vmatprep.subr.bf16.mxu0 0
    %624 = vmatpush1.bf16.msra.mxu0 0
    %625 = vmatprep.subr.bf16.mxu0 0
    %626 = vmatpush1.bf16.msra.mxu0 0
    %627 = vmatprep.mubr.bf16.mxu0 0
    %628 = vmatmul.mubr.bf16.gmra.mrb[0].mxu0 %v589
    %v629 = vpop.f32.mrb[0].mxu0
    %v630 = vadd.f32 0.0, %v629
    %v631 = vpop.f32.mrb[0].mxu0
    %v632 = vpop.f32.mrb[0].mxu0
    %v633 = vpop.f32.mrb[0].mxu0
    %634 = vdwg.mxu0
    %v636 = vsel %vm563, %v587, 0
    %v639 = vsel %vm591, %v457, 0
    %641 = vmatprep.subr.bf16.mxu0 0
    %642 = vmatpush1.bf16.msra.mxu0 %v639
    %643 = vmatprep.subr.bf16.mxu0 0
    %644 = vmatpush1.bf16.msra.mxu0 0
    %645 = vmatprep.subr.bf16.mxu0 0
    %646 = vmatpush1.bf16.msra.mxu0 0
    %647 = vmatprep.subr.bf16.mxu0 0
    %648 = vmatpush1.bf16.msra.mxu0 0
    %649 = vmatprep.subr.bf16.mxu0 0
    %650 = vmatpush1.bf16.msra.mxu0 0
    %651 = vmatprep.subr.bf16.mxu0 0
    %652 = vmatpush1.bf16.msra.mxu0 0
    %653 = vmatprep.subr.bf16.mxu0 0
    %654 = vmatpush1.bf16.msra.mxu0 0
    %655 = vmatprep.subr.bf16.mxu0 0
    %656 = vmatpush1.bf16.msra.mxu0 0
    %657 = vmatprep.subr.bf16.mxu0 0
    %658 = vmatpush1.bf16.msra.mxu0 0
    %659 = vmatprep.subr.bf16.mxu0 0
    %660 = vmatpush1.bf16.msra.mxu0 0
    %661 = vmatprep.subr.bf16.mxu0 0
    %662 = vmatpush1.bf16.msra.mxu0 0
    %663 = vmatprep.subr.bf16.mxu0 0
    %664 = vmatpush1.bf16.msra.mxu0 0
    %665 = vmatprep.subr.bf16.mxu0 0
    %666 = vmatpush1.bf16.msra.mxu0 0
    %667 = vmatprep.subr.bf16.mxu0 0
    %668 = vmatpush1.bf16.msra.mxu0 0
    %669 = vmatprep.subr.bf16.mxu0 0
    %670 = vmatpush1.bf16.msra.mxu0 0
    %671 = vmatprep.subr.bf16.mxu0 0
    %672 = vmatpush1.bf16.msra.mxu0 0
    %673 = vmatprep.mubr.bf16.mxu0 0
    %674 = vmatmul.mubr.bf16.gmra.mrb[0].mxu0 %v636
    %v675 = vpop.f32.mrb[0].mxu0
    %v676 = vadd.f32 0.0, %v675
    %v677 = vpop.f32.mrb[0].mxu0
    %v678 = vpop.f32.mrb[0].mxu0
    %v679 = vpop.f32.mrb[0].mxu0
    %680 = vdwg.mxu0
    %v681 = vpack.c.bf16 %v676, %v630
    %v682 = vld [vmem:[#allocation10] sm:$0xf]
    %v683 = vld [vmem:[#allocation10 + $0x4] sm:$0xf]
    %v684 = vld [vmem:[#allocation10 + $0x8] sm:$0xf]
    %v685 = vld [vmem:[#allocation10 + $0xc] sm:$0xf]
    %687 = vrot.lane.b32.xlu0 %v452, 96
    %v688 = vpop.permute.xlu0 %687
    %690 = vrot.lane.b32.xlu0 %v454, 96
    %v691 = vpop.permute.xlu0 %690
    %v693 = vsel %vm470, %v688, 0
    %v696 = vsel %vm470, %v691, 0
    %698 = vmatprep.subr.bf16.mxu0 0
    %699 = vmatpush1.bf16.xpose.msra.mxu0 %v696
    %700 = vmatprep.subr.bf16.mxu0 0
    %701 = vmatpush1.bf16.xpose.msra.mxu0 0
    %702 = vmatprep.subr.bf16.mxu0 0
    %703 = vmatpush1.bf16.xpose.msra.mxu0 0
    %704 = vmatprep.subr.bf16.mxu0 0
    %705 = vmatpush1.bf16.xpose.msra.mxu0 0
    %706 = vmatprep.subr.bf16.mxu0 0
    %707 = vmatpush1.bf16.xpose.msra.mxu0 0
    %708 = vmatprep.subr.bf16.mxu0 0
    %709 = vmatpush1.bf16.xpose.msra.mxu0 0
    %710 = vmatprep.subr.bf16.mxu0 0
    %711 = vmatpush1.bf16.xpose.msra.mxu0 0
    %712 = vmatprep.subr.bf16.mxu0 0
    %713 = vmatpush1.bf16.xpose.msra.mxu0 0
    %714 = vmatprep.subr.bf16.mxu0 0
    %715 = vmatpush1.bf16.xpose.msra.mxu0 0
    %716 = vmatprep.subr.bf16.mxu0 0
    %717 = vmatpush1.bf16.xpose.msra.mxu0 0
    %718 = vmatprep.subr.bf16.mxu0 0
    %719 = vmatpush1.bf16.xpose.msra.mxu0 0
    %720 = vmatprep.subr.bf16.mxu0 0
    %721 = vmatpush1.bf16.xpose.msra.mxu0 0
    %722 = vmatprep.subr.bf16.mxu0 0
    %723 = vmatpush1.bf16.xpose.msra.mxu0 0
    %724 = vmatprep.subr.bf16.mxu0 0
    %725 = vmatpush1.bf16.xpose.msra.mxu0 0
    %726 = vmatprep.subr.bf16.mxu0 0
    %727 = vmatpush1.bf16.xpose.msra.mxu0 0
    %728 = vmatprep.subr.bf16.mxu0 0
    %729 = vmatpush1.bf16.xpose.msra.mxu0 0
    %730 = vmatprep.mubr.bf16.mxu0 0
    %731 = vmatmul.mubr.bf16.gmra.mrb[0].mxu0 %v693
    %v732 = vpop.f32.mrb[0].mxu0
    %v733 = vadd.f32 %v463, %v732
    %v734 = vpop.f32.mrb[0].mxu0
    %v735 = vpop.f32.mrb[0].mxu0
    %v736 = vpop.f32.mrb[0].mxu0
    %737 = vdwg.mxu0
    %739 = vrot.lane.b32.xlu0 %v453, 96
    %v740 = vpop.permute.xlu0 %739
    %742 = vrot.lane.b32.xlu0 %v455, 96
    %v743 = vpop.permute.xlu0 %742
    %v745 = vsel %vm470, %v740, 0
    %v748 = vsel %vm470, %v743, 0
    %750 = vmatprep.subr.bf16.mxu0 0
    %751 = vmatpush1.bf16.xpose.msra.mxu0 %v748
    %752 = vmatprep.subr.bf16.mxu0 0
    %753 = vmatpush1.bf16.xpose.msra.mxu0 0
    %754 = vmatprep.subr.bf16.mxu0 0
    %755 = vmatpush1.bf16.xpose.msra.mxu0 0
    %756 = vmatprep.subr.bf16.mxu0 0
    %757 = vmatpush1.bf16.xpose.msra.mxu0 0
    %758 = vmatprep.subr.bf16.mxu0 0
    %759 = vmatpush1.bf16.xpose.msra.mxu0 0
    %760 = vmatprep.subr.bf16.mxu0 0
    %761 = vmatpush1.bf16.xpose.msra.mxu0 0
    %762 = vmatprep.subr.bf16.mxu0 0
    %763 = vmatpush1.bf16.xpose.msra.mxu0 0
    %764 = vmatprep.subr.bf16.mxu0 0
    %765 = vmatpush1.bf16.xpose.msra.mxu0 0
    %766 = vmatprep.subr.bf16.mxu0 0
    %767 = vmatpush1.bf16.xpose.msra.mxu0 0
    %768 = vmatprep.subr.bf16.mxu0 0
    %769 = vmatpush1.bf16.xpose.msra.mxu0 0
    %770 = vmatprep.subr.bf16.mxu0 0
    %771 = vmatpush1.bf16.xpose.msra.mxu0 0
    %772 = vmatprep.subr.bf16.mxu0 0
    %773 = vmatpush1.bf16.xpose.msra.mxu0 0
    %774 = vmatprep.subr.bf16.mxu0 0
    %775 = vmatpush1.bf16.xpose.msra.mxu0 0
    %776 = vmatprep.subr.bf16.mxu0 0
    %777 = vmatpush1.bf16.xpose.msra.mxu0 0
    %778 = vmatprep.subr.bf16.mxu0 0
    %779 = vmatpush1.bf16.xpose.msra.mxu0 0
    %780 = vmatprep.subr.bf16.mxu0 0
    %781 = vmatpush1.bf16.xpose.msra.mxu0 0
    %782 = vmatprep.mubr.bf16.mxu0 0
    %783 = vmatmul.mubr.bf16.gmra.mrb[0].mxu0 %v745
    %v784 = vpop.f32.mrb[0].mxu0
    %v785 = vadd.f32 %v467, %v784
    %v786 = vpop.f32.mrb[0].mxu0
    %v787 = vpop.f32.mrb[0].mxu0
    %v788 = vpop.f32.mrb[0].mxu0
    %789 = vdwg.mxu0
    %v790 = vsel %vm563, %v733, -inf
    %791 = vmax.xlane.f32.xlu0 %v790
    %v792 = vpop.xlane.xlu0 %791
    %v793 = vsel %vm563, %v785, -inf
    %794 = vmax.xlane.f32.xlu0 %v793
    %v795 = vpop.xlane.xlu0 %794
    %v796 = vsub.f32 %v733, %v792
    %v797 = vsub.f32 %v785, %v795
    %v798 = vmul.f32 %v796, 1.442695
    %v799 = vpow.pop %v798
    %v800 = vmul.f32 %v797, 1.442695
    %v801 = vpow.pop %v800
    %v802 = vsel %vm563, %v799, 0.0
    %803 = vadd.xlane.f32.xlu0 %v802
    %v804 = vpop.xlane.xlu0 %803
    %v805 = vsel %vm563, %v801, 0.0
    %806 = vadd.xlane.f32.xlu0 %v805
    %v807 = vpop.xlane.xlu0 %806
    %v808 = vrcp.pop %v804
    %v809 = vrcp.pop %v807
    %v810 = vmul.f32 %v799, %v808
    %v811 = vmul.f32 %v801, %v809
    %v812 = vpack.c.bf16 %v810, %v810
    %v813 = vpack.c.bf16 %v811, %v811
    %815 = vrot.lane.b32.xlu0 %v456, 96
    %v816 = vpop.permute.xlu0 %815
    %v818 = vsel %vm563, %v812, 0
    %v821 = vsel %vm591, %v816, 0
    %823 = vmatprep.subr.bf16.mxu0 0
    %824 = vmatpush1.bf16.msra.mxu0 %v821
    %825 = vmatprep.subr.bf16.mxu0 0
    %826 = vmatpush1.bf16.msra.mxu0 0
    %827 = vmatprep.subr.bf16.mxu0 0
    %828 = vmatpush1.bf16.msra.mxu0 0
    %829 = vmatprep.subr.bf16.mxu0 0
    %830 = vmatpush1.bf16.msra.mxu0 0
    %831 = vmatprep.subr.bf16.mxu0 0
    %832 = vmatpush1.bf16.msra.mxu0 0
    %833 = vmatprep.subr.bf16.mxu0 0
    %834 = vmatpush1.bf16.msra.mxu0 0
    %835 = vmatprep.subr.bf16.mxu0 0
    %836 = vmatpush1.bf16.msra.mxu0 0
    %837 = vmatprep.subr.bf16.mxu0 0
    %838 = vmatpush1.bf16.msra.mxu0 0
    %839 = vmatprep.subr.bf16.mxu0 0
    %840 = vmatpush1.bf16.msra.mxu0 0
    %841 = vmatprep.subr.bf16.mxu0 0
    %842 = vmatpush1.bf16.msra.mxu0 0
    %843 = vmatprep.subr.bf16.mxu0 0
    %844 = vmatpush1.bf16.msra.mxu0 0
    %845 = vmatprep.subr.bf16.mxu0 0
    %846 = vmatpush1.bf16.msra.mxu0 0
    %847 = vmatprep.subr.bf16.mxu0 0
    %848 = vmatpush1.bf16.msra.mxu0 0
    %849 = vmatprep.subr.bf16.mxu0 0
    %850 = vmatpush1.bf16.msra.mxu0 0
    %851 = vmatprep.subr.bf16.mxu0 0
    %852 = vmatpush1.bf16.msra.mxu0 0
    %853 = vmatprep.subr.bf16.mxu0 0
    %854 = vmatpush1.bf16.msra.mxu0 0
    %855 = vmatprep.mubr.bf16.mxu0 0
    %856 = vmatmul.mubr.bf16.gmra.mrb[0].mxu0 %v818
    %v857 = vpop.f32.mrb[0].mxu0
    %v858 = vadd.f32 0.0, %v857
    %v859 = vpop.f32.mrb[0].mxu0
    %v860 = vpop.f32.mrb[0].mxu0
    %v861 = vpop.f32.mrb[0].mxu0
    %862 = vdwg.mxu0
    %864 = vrot.lane.b32.xlu0 %v457, 96
    %v865 = vpop.permute.xlu0 %864
    %v867 = vsel %vm563, %v813, 0
    %v870 = vsel %vm591, %v865, 0
    %872 = vmatprep.subr.bf16.mxu0 0
    %873 = vmatpush1.bf16.msra.mxu0 %v870
    %874 = vmatprep.subr.bf16.mxu0 0
    %875 = vmatpush1.bf16.msra.mxu0 0
    %876 = vmatprep.subr.bf16.mxu0 0
    %877 = vmatpush1.bf16.msra.mxu0 0
    %878 = vmatprep.subr.bf16.mxu0 0
    %879 = vmatpush1.bf16.msra.mxu0 0
    %880 = vmatprep.subr.bf16.mxu0 0
    %881 = vmatpush1.bf16.msra.mxu0 0
    %882 = vmatprep.subr.bf16.mxu0 0
    %883 = vmatpush1.bf16.msra.mxu0 0
    %884 = vmatprep.subr.bf16.mxu0 0
    %885 = vmatpush1.bf16.msra.mxu0 0
    %886 = vmatprep.subr.bf16.mxu0 0
    %887 = vmatpush1.bf16.msra.mxu0 0
    %888 = vmatprep.subr.bf16.mxu0 0
    %889 = vmatpush1.bf16.msra.mxu0 0
    %890 = vmatprep.subr.bf16.mxu0 0
    %891 = vmatpush1.bf16.msra.mxu0 0
    %892 = vmatprep.subr.bf16.mxu0 0
    %893 = vmatpush1.bf16.msra.mxu0 0
    %894 = vmatprep.subr.bf16.mxu0 0
    %895 = vmatpush1.bf16.msra.mxu0 0
    %896 = vmatprep.subr.bf16.mxu0 0
    %897 = vmatpush1.bf16.msra.mxu0 0
    %898 = vmatprep.subr.bf16.mxu0 0
    %899 = vmatpush1.bf16.msra.mxu0 0
    %900 = vmatprep.subr.bf16.mxu0 0
    %901 = vmatpush1.bf16.msra.mxu0 0
    %902 = vmatprep.subr.bf16.mxu0 0
    %903 = vmatpush1.bf16.msra.mxu0 0
    %904 = vmatprep.mubr.bf16.mxu0 0
    %905 = vmatmul.mubr.bf16.gmra.mrb[0].mxu0 %v867
    %v906 = vpop.f32.mrb[0].mxu0
    %v907 = vadd.f32 0.0, %v906
    %v908 = vpop.f32.mrb[0].mxu0
    %v909 = vpop.f32.mrb[0].mxu0
    %v910 = vpop.f32.mrb[0].mxu0
    %911 = vdwg.mxu0
    %v912 = vpack.c.bf16 %v907, %v858
    %v913 = vld [vmem:[#allocation10 + $0x10] sm:$0xf]
    %v914 = vld [vmem:[#allocation10 + $0x14] sm:$0xf]
    %v915 = vld [vmem:[#allocation10 + $0x18] sm:$0xf]
    %v916 = vld [vmem:[#allocation10 + $0x1c] sm:$0xf]
    %v921 = vunpack.c.l.b16 %v913
    %v922 = vunpack.c.l.b16 %v914
    %v923 = vunpack.c.l.b16 %v915
    %v924 = vunpack.c.l.b16 %v916
    %v925 = vpack.c.b16 %v922, %v921
    %v926 = vpack.c.b16 %v924, %v923
    %v930 = vsel %vm470, %v912, 0
    %932 = vmatprep.subr.bf16.mxu0 0
    %933 = vmatpush1.bf16.msra.mxu0 %v925
    %934 = vmatprep.subr.bf16.mxu0 0
    %935 = vmatpush1.bf16.msra.mxu0 %v926
    %936 = vmatprep.subr.bf16.mxu0 0
    %937 = vmatpush1.bf16.msra.mxu0 0
    %938 = vmatprep.subr.bf16.mxu0 0
    %939 = vmatpush1.bf16.msra.mxu0 0
    %940 = vmatprep.subr.bf16.mxu0 0
    %941 = vmatpush1.bf16.msra.mxu0 0
    %942 = vmatprep.subr.bf16.mxu0 0
    %943 = vmatpush1.bf16.msra.mxu0 0
    %944 = vmatprep.subr.bf16.mxu0 0
    %945 = vmatpush1.bf16.msra.mxu0 0
    %946 = vmatprep.subr.bf16.mxu0 0
    %947 = vmatpush1.bf16.msra.mxu0 0
    %948 = vmatprep.subr.bf16.mxu0 0
    %949 = vmatpush1.bf16.msra.mxu0 0
    %950 = vmatprep.subr.bf16.mxu0 0
    %951 = vmatpush1.bf16.msra.mxu0 0
    %952 = vmatprep.subr.bf16.mxu0 0
    %953 = vmatpush1.bf16.msra.mxu0 0
    %954 = vmatprep.subr.bf16.mxu0 0
    %955 = vmatpush1.bf16.msra.mxu0 0
    %956 = vmatprep.subr.bf16.mxu0 0
    %957 = vmatpush1.bf16.msra.mxu0 0
    %958 = vmatprep.subr.bf16.mxu0 0
    %959 = vmatpush1.bf16.msra.mxu0 0
    %960 = vmatprep.subr.bf16.mxu0 0
    %961 = vmatpush1.bf16.msra.mxu0 0
    %962 = vmatprep.subr.bf16.mxu0 0
    %963 = vmatpush1.bf16.msra.mxu0 0
    %964 = vmatprep.mubr.bf16.mxu0 0
    %965 = vmatmul.mubr.bf16.gmra.mrb[0].mxu0 %v930
    %v966 = vpop.f32.mrb[0].mxu0
    %v967 = vadd.f32 0.0, %v966
    %v968 = vpop.f32.mrb[0].mxu0
    %v969 = vpop.f32.mrb[0].mxu0
    %v970 = vadd.f32 0.0, %v969
    %v971 = vpop.f32.mrb[0].mxu0
    %972 = vdwg.mxu0
    %v977 = vunpack.c.l.b16 %v682
    %v978 = vunpack.c.l.b16 %v683
    %v979 = vunpack.c.l.b16 %v684
    %v980 = vunpack.c.l.b16 %v685
    %v981 = vpack.c.b16 %v978, %v977
    %v982 = vpack.c.b16 %v980, %v979
    %v986 = vsel %vm470, %v681, 0
    %988 = vmatprep.subr.bf16.mxu0 0
    %989 = vmatpush1.bf16.msra.mxu0 %v981
    %990 = vmatprep.subr.bf16.mxu0 0
    %991 = vmatpush1.bf16.msra.mxu0 %v982
    %992 = vmatprep.subr.bf16.mxu0 0
    %993 = vmatpush1.bf16.msra.mxu0 0
    %994 = vmatprep.subr.bf16.mxu0 0
    %995 = vmatpush1.bf16.msra.mxu0 0
    %996 = vmatprep.subr.bf16.mxu0 0
    %997 = vmatpush1.bf16.msra.mxu0 0
    %998 = vmatprep.subr.bf16.mxu0 0
    %999 = vmatpush1.bf16.msra.mxu0 0
    %1000 = vmatprep.subr.bf16.mxu0 0
    %1001 = vmatpush1.bf16.msra.mxu0 0
    %1002 = vmatprep.subr.bf16.mxu0 0
    %1003 = vmatpush1.bf16.msra.mxu0 0
    %1004 = vmatprep.subr.bf16.mxu0 0
    %1005 = vmatpush1.bf16.msra.mxu0 0
    %1006 = vmatprep.subr.bf16.mxu0 0
    %1007 = vmatpush1.bf16.msra.mxu0 0
    %1008 = vmatprep.subr.bf16.mxu0 0
    %1009 = vmatpush1.bf16.msra.mxu0 0
    %1010 = vmatprep.subr.bf16.mxu0 0
    %1011 = vmatpush1.bf16.msra.mxu0 0
    %1012 = vmatprep.subr.bf16.mxu0 0
    %1013 = vmatpush1.bf16.msra.mxu0 0
    %1014 = vmatprep.subr.bf16.mxu0 0
    %1015 = vmatpush1.bf16.msra.mxu0 0
    %1016 = vmatprep.subr.bf16.mxu0 0
    %1017 = vmatpush1.bf16.msra.mxu0 0
    %1018 = vmatprep.subr.bf16.mxu0 0
    %1019 = vmatpush1.bf16.msra.mxu0 0
    %1020 = vmatprep.mubr.bf16.mxu0 0
    %1021 = vmatmul.mubr.bf16.gmra.mrb[0].mxu0 %v986
    %v1022 = vpop.f32.mrb[0].mxu0
    %v1023 = vadd.f32 %v967, %v1022
    %v1024 = vpop.f32.mrb[0].mxu0
    %v1025 = vpop.f32.mrb[0].mxu0
    %v1026 = vadd.f32 %v970, %v1025
    %v1027 = vpop.f32.mrb[0].mxu0
    %1028 = vdwg.mxu0
    %1029 = vrot.lane.b32.xlu0 %v452, 64
    %v1030 = vpop.permute.xlu0 %1029
    %1031 = vrot.lane.b32.xlu0 %v454, 64
    %v1032 = vpop.permute.xlu0 %1031
    %v1034 = vsel %vm470, %v1030, 0
    %v1037 = vsel %vm470, %v1032, 0
    %1039 = vmatprep.subr.bf16.mxu0 0
    %1040 = vmatpush1.bf16.xpose.msra.mxu0 %v1037
    %1041 = vmatprep.subr.bf16.mxu0 0
    %1042 = vmatpush1.bf16.xpose.msra.mxu0 0
    %1043 = vmatprep.subr.bf16.mxu0 0
    %1044 = vmatpush1.bf16.xpose.msra.mxu0 0
    %1045 = vmatprep.subr.bf16.mxu0 0
    %1046 = vmatpush1.bf16.xpose.msra.mxu0 0
    %1047 = vmatprep.subr.bf16.mxu0 0
    %1048 = vmatpush1.bf16.xpose.msra.mxu0 0
    %1049 = vmatprep.subr.bf16.mxu0 0
    %1050 = vmatpush1.bf16.xpose.msra.mxu0 0
    %1051 = vmatprep.subr.bf16.mxu0 0
    %1052 = vmatpush1.bf16.xpose.msra.mxu0 0
    %1053 = vmatprep.subr.bf16.mxu0 0
    %1054 = vmatpush1.bf16.xpose.msra.mxu0 0
    %1055 = vmatprep.subr.bf16.mxu0 0
    %1056 = vmatpush1.bf16.xpose.msra.mxu0 0
    %1057 = vmatprep.subr.bf16.mxu0 0
    %1058 = vmatpush1.bf16.xpose.msra.mxu0 0
    %1059 = vmatprep.subr.bf16.mxu0 0
    %1060 = vmatpush1.bf16.xpose.msra.mxu0 0
    %1061 = vmatprep.subr.bf16.mxu0 0
    %1062 = vmatpush1.bf16.xpose.msra.mxu0 0
    %1063 = vmatprep.subr.bf16.mxu0 0
    %1064 = vmatpush1.bf16.xpose.msra.mxu0 0
    %1065 = vmatprep.subr.bf16.mxu0 0
    %1066 = vmatpush1.bf16.xpose.msra.mxu0 0
    %1067 = vmatprep.subr.bf16.mxu0 0
    %1068 = vmatpush1.bf16.xpose.msra.mxu0 0
    %1069 = vmatprep.subr.bf16.mxu0 0
    %1070 = vmatpush1.bf16.xpose.msra.mxu0 0
    %1071 = vmatprep.mubr.bf16.mxu0 0
    %1072 = vmatmul.mubr.bf16.gmra.mrb[0].mxu0 %v1034
    %v1073 = vpop.f32.mrb[0].mxu0
    %v1074 = vadd.f32 %v463, %v1073
    %v1075 = vpop.f32.mrb[0].mxu0
    %v1076 = vpop.f32.mrb[0].mxu0
    %v1077 = vpop.f32.mrb[0].mxu0
    %1078 = vdwg.mxu0
    %1079 = vrot.lane.b32.xlu0 %v453, 64
    %v1080 = vpop.permute.xlu0 %1079
    %1081 = vrot.lane.b32.xlu0 %v455, 64
    %v1082 = vpop.permute.xlu0 %1081
    %v1084 = vsel %vm470, %v1080, 0
    %v1087 = vsel %vm470, %v1082, 0
    %1089 = vmatprep.subr.bf16.mxu0 0
    %1090 = vmatpush1.bf16.xpose.msra.mxu0 %v1087
    %1091 = vmatprep.subr.bf16.mxu0 0
    %1092 = vmatpush1.bf16.xpose.msra.mxu0 0
    %1093 = vmatprep.subr.bf16.mxu0 0
    %1094 = vmatpush1.bf16.xpose.msra.mxu0 0
    %1095 = vmatprep.subr.bf16.mxu0 0
    %1096 = vmatpush1.bf16.xpose.msra.mxu0 0
    %1097 = vmatprep.subr.bf16.mxu0 0
    %1098 = vmatpush1.bf16.xpose.msra.mxu0 0
    %1099 = vmatprep.subr.bf16.mxu0 0
    %1100 = vmatpush1.bf16.xpose.msra.mxu0 0
    %1101 = vmatprep.subr.bf16.mxu0 0
    %1102 = vmatpush1.bf16.xpose.msra.mxu0 0
    %1103 = vmatprep.subr.bf16.mxu0 0
    %1104 = vmatpush1.bf16.xpose.msra.mxu0 0
    %1105 = vmatprep.subr.bf16.mxu0 0
    %1106 = vmatpush1.bf16.xpose.msra.mxu0 0
    %1107 = vmatprep.subr.bf16.mxu0 0
    %1108 = vmatpush1.bf16.xpose.msra.mxu0 0
    %1109 = vmatprep.subr.bf16.mxu0 0
    %1110 = vmatpush1.bf16.xpose.msra.mxu0 0
    %1111 = vmatprep.subr.bf16.mxu0 0
    %1112 = vmatpush1.bf16.xpose.msra.mxu0 0
    %1113 = vmatprep.subr.bf16.mxu0 0
    %1114 = vmatpush1.bf16.xpose.msra.mxu0 0
    %1115 = vmatprep.subr.bf16.mxu0 0
    %1116 = vmatpush1.bf16.xpose.msra.mxu0 0
    %1117 = vmatprep.subr.bf16.mxu0 0
    %1118 = vmatpush1.bf16.xpose.msra.mxu0 0
    %1119 = vmatprep.subr.bf16.mxu0 0
    %1120 = vmatpush1.bf16.xpose.msra.mxu0 0
    %1121 = vmatprep.mubr.bf16.mxu0 0
    %1122 = vmatmul.mubr.bf16.gmra.mrb[0].mxu0 %v1084
    %v1123 = vpop.f32.mrb[0].mxu0
    %v1124 = vadd.f32 %v467, %v1123
    %v1125 = vpop.f32.mrb[0].mxu0
    %v1126 = vpop.f32.mrb[0].mxu0
    %v1127 = vpop.f32.mrb[0].mxu0
    %1128 = vdwg.mxu0
    %v1129 = vsel %vm563, %v1074, -inf
    %1130 = vmax.xlane.f32.xlu0 %v1129
    %v1131 = vpop.xlane.xlu0 %1130
    %v1132 = vsel %vm563, %v1124, -inf
    %1133 = vmax.xlane.f32.xlu0 %v1132
    %v1134 = vpop.xlane.xlu0 %1133
    %v1135 = vsub.f32 %v1074, %v1131
    %v1136 = vsub.f32 %v1124, %v1134
    %v1137 = vmul.f32 %v1135, 1.442695
    %v1138 = vpow.pop %v1137
    %v1139 = vmul.f32 %v1136, 1.442695
    %v1140 = vpow.pop %v1139
    %v1141 = vsel %vm563, %v1138, 0.0
    %1142 = vadd.xlane.f32.xlu0 %v1141
    %v1143 = vpop.xlane.xlu0 %1142
    %v1144 = vsel %vm563, %v1140, 0.0
    %1145 = vadd.xlane.f32.xlu0 %v1144
    %v1146 = vpop.xlane.xlu0 %1145
    %v1147 = vrcp.pop %v1143
    %v1148 = vrcp.pop %v1146
    %v1149 = vmul.f32 %v1138, %v1147
    %v1150 = vmul.f32 %v1140, %v1148
    %v1151 = vpack.c.bf16 %v1149, %v1149
    %v1152 = vpack.c.bf16 %v1150, %v1150
    %1153 = vrot.lane.b32.xlu0 %v456, 64
    %v1154 = vpop.permute.xlu0 %1153
    %v1156 = vsel %vm563, %v1151, 0
    %v1159 = vsel %vm591, %v1154, 0
    %1161 = vmatprep.subr.bf16.mxu0 0
    %1162 = vmatpush1.bf16.msra.mxu0 %v1159
    %1163 = vmatprep.subr.bf16.mxu0 0
    %1164 = vmatpush1.bf16.msra.mxu0 0
    %1165 = vmatprep.subr.bf16.mxu0 0
    %1166 = vmatpush1.bf16.msra.mxu0 0
    %1167 = vmatprep.subr.bf16.mxu0 0
    %1168 = vmatpush1.bf16.msra.mxu0 0
    %1169 = vmatprep.subr.bf16.mxu0 0
    %1170 = vmatpush1.bf16.msra.mxu0 0
    %1171 = vmatprep.subr.bf16.mxu0 0
    %1172 = vmatpush1.bf16.msra.mxu0 0
    %1173 = vmatprep.subr.bf16.mxu0 0
    %1174 = vmatpush1.bf16.msra.mxu0 0
    %1175 = vmatprep.subr.bf16.mxu0 0
    %1176 = vmatpush1.bf16.msra.mxu0 0
    %1177 = vmatprep.subr.bf16.mxu0 0
    %1178 = vmatpush1.bf16.msra.mxu0 0
    %1179 = vmatprep.subr.bf16.mxu0 0
    %1180 = vmatpush1.bf16.msra.mxu0 0
    %1181 = vmatprep.subr.bf16.mxu0 0
    %1182 = vmatpush1.bf16.msra.mxu0 0
    %1183 = vmatprep.subr.bf16.mxu0 0
    %1184 = vmatpush1.bf16.msra.mxu0 0
    %1185 = vmatprep.subr.bf16.mxu0 0
    %1186 = vmatpush1.bf16.msra.mxu0 0
    %1187 = vmatprep.subr.bf16.mxu0 0
    %1188 = vmatpush1.bf16.msra.mxu0 0
    %1189 = vmatprep.subr.bf16.mxu0 0
    %1190 = vmatpush1.bf16.msra.mxu0 0
    %1191 = vmatprep.subr.bf16.mxu0 0
    %1192 = vmatpush1.bf16.msra.mxu0 0
    %1193 = vmatprep.mubr.bf16.mxu0 0
    %1194 = vmatmul.mubr.bf16.gmra.mrb[0].mxu0 %v1156
    %v1195 = vpop.f32.mrb[0].mxu0
    %v1196 = vadd.f32 0.0, %v1195
    %v1197 = vpop.f32.mrb[0].mxu0
    %v1198 = vpop.f32.mrb[0].mxu0
    %v1199 = vpop.f32.mrb[0].mxu0
    %1200 = vdwg.mxu0
    %1201 = vrot.lane.b32.xlu0 %v457, 64
    %v1202 = vpop.permute.xlu0 %1201
    %v1204 = vsel %vm563, %v1152, 0
    %v1207 = vsel %vm591, %v1202, 0
    %1209 = vmatprep.subr.bf16.mxu0 0
    %1210 = vmatpush1.bf16.msra.mxu0 %v1207
    %1211 = vmatprep.subr.bf16.mxu0 0
    %1212 = vmatpush1.bf16.msra.mxu0 0
    %1213 = vmatprep.subr.bf16.mxu0 0
    %1214 = vmatpush1.bf16.msra.mxu0 0
    %1215 = vmatprep.subr.bf16.mxu0 0
    %1216 = vmatpush1.bf16.msra.mxu0 0
    %1217 = vmatprep.subr.bf16.mxu0 0
    %1218 = vmatpush1.bf16.msra.mxu0 0
    %1219 = vmatprep.subr.bf16.mxu0 0
    %1220 = vmatpush1.bf16.msra.mxu0 0
    %1221 = vmatprep.subr.bf16.mxu0 0
    %1222 = vmatpush1.bf16.msra.mxu0 0
    %1223 = vmatprep.subr.bf16.mxu0 0
    %1224 = vmatpush1.bf16.msra.mxu0 0
    %1225 = vmatprep.subr.bf16.mxu0 0
    %1226 = vmatpush1.bf16.msra.mxu0 0
    %1227 = vmatprep.subr.bf16.mxu0 0
    %1228 = vmatpush1.bf16.msra.mxu0 0
    %1229 = vmatprep.subr.bf16.mxu0 0
    %1230 = vmatpush1.bf16.msra.mxu0 0
    %1231 = vmatprep.subr.bf16.mxu0 0
    %1232 = vmatpush1.bf16.msra.mxu0 0
    %1233 = vmatprep.subr.bf16.mxu0 0
    %1234 = vmatpush1.bf16.msra.mxu0 0
    %1235 = vmatprep.subr.bf16.mxu0 0
    %1236 = vmatpush1.bf16.msra.mxu0 0
    %1237 = vmatprep.subr.bf16.mxu0 0
    %1238 = vmatpush1.bf16.msra.mxu0 0
    %1239 = vmatprep.subr.bf16.mxu0 0
    %1240 = vmatpush1.bf16.msra.mxu0 0
    %1241 = vmatprep.mubr.bf16.mxu0 0
    %1242 = vmatmul.mubr.bf16.gmra.mrb[0].mxu0 %v1204
    %v1243 = vpop.f32.mrb[0].mxu0
    %v1244 = vadd.f32 0.0, %v1243
    %v1245 = vpop.f32.mrb[0].mxu0
    %v1246 = vpop.f32.mrb[0].mxu0
    %v1247 = vpop.f32.mrb[0].mxu0
    %1248 = vdwg.mxu0
    %v1249 = vpack.c.bf16 %v1244, %v1196
    %v1250 = vld [vmem:[#allocation10 + $0x20] sm:$0xf]
    %v1251 = vld [vmem:[#allocation10 + $0x24] sm:$0xf]
    %v1252 = vld [vmem:[#allocation10 + $0x28] sm:$0xf]
    %v1253 = vld [vmem:[#allocation10 + $0x2c] sm:$0xf]
    %v1258 = vunpack.c.l.b16 %v1250
    %v1259 = vunpack.c.l.b16 %v1251
    %v1260 = vunpack.c.l.b16 %v1252
    %v1261 = vunpack.c.l.b16 %v1253
    %v1262 = vpack.c.b16 %v1259, %v1258
    %v1263 = vpack.c.b16 %v1261, %v1260
    %v1267 = vsel %vm470, %v1249, 0
    %1269 = vmatprep.subr.bf16.mxu0 0
    %1270 = vmatpush1.bf16.msra.mxu0 %v1262
    %1271 = vmatprep.subr.bf16.mxu0 0
    %1272 = vmatpush1.bf16.msra.mxu0 %v1263
    %1273 = vmatprep.subr.bf16.mxu0 0
    %1274 = vmatpush1.bf16.msra.mxu0 0
    %1275 = vmatprep.subr.bf16.mxu0 0
    %1276 = vmatpush1.bf16.msra.mxu0 0
    %1277 = vmatprep.subr.bf16.mxu0 0
    %1278 = vmatpush1.bf16.msra.mxu0 0
    %1279 = vmatprep.subr.bf16.mxu0 0
    %1280 = vmatpush1.bf16.msra.mxu0 0
    %1281 = vmatprep.subr.bf16.mxu0 0
    %1282 = vmatpush1.bf16.msra.mxu0 0
    %1283 = vmatprep.subr.bf16.mxu0 0
    %1284 = vmatpush1.bf16.msra.mxu0 0
    %1285 = vmatprep.subr.bf16.mxu0 0
    %1286 = vmatpush1.bf16.msra.mxu0 0
    %1287 = vmatprep.subr.bf16.mxu0 0
    %1288 = vmatpush1.bf16.msra.mxu0 0
    %1289 = vmatprep.subr.bf16.mxu0 0
    %1290 = vmatpush1.bf16.msra.mxu0 0
    %1291 = vmatprep.subr.bf16.mxu0 0
    %1292 = vmatpush1.bf16.msra.mxu0 0
    %1293 = vmatprep.subr.bf16.mxu0 0
    %1294 = vmatpush1.bf16.msra.mxu0 0
    %1295 = vmatprep.subr.bf16.mxu0 0
    %1296 = vmatpush1.bf16.msra.mxu0 0
    %1297 = vmatprep.subr.bf16.mxu0 0
    %1298 = vmatpush1.bf16.msra.mxu0 0
    %1299 = vmatprep.subr.bf16.mxu0 0
    %1300 = vmatpush1.bf16.msra.mxu0 0
    %1301 = vmatprep.mubr.bf16.mxu0 0
    %1302 = vmatmul.mubr.bf16.gmra.mrb[0].mxu0 %v1267
    %v1303 = vpop.f32.mrb[0].mxu0
    %v1304 = vadd.f32 0.0, %v1303
    %v1305 = vpop.f32.mrb[0].mxu0
    %v1306 = vpop.f32.mrb[0].mxu0
    %v1307 = vadd.f32 0.0, %v1306
    %v1308 = vpop.f32.mrb[0].mxu0
    %1309 = vdwg.mxu0
    %v1310 = vadd.f32 %v1023, %v1304
    %v1311 = vadd.f32 %v1026, %v1307
    %1312 = vrot.lane.b32.xlu0 %v452, 32
    %v1313 = vpop.permute.xlu0 %1312
    %1314 = vrot.lane.b32.xlu0 %v454, 32
    %v1315 = vpop.permute.xlu0 %1314
    %v1317 = vsel %vm470, %v1313, 0
    %v1320 = vsel %vm470, %v1315, 0
    %1322 = vmatprep.subr.bf16.mxu0 0
    %1323 = vmatpush1.bf16.xpose.msra.mxu0 %v1320
    %1324 = vmatprep.subr.bf16.mxu0 0
    %1325 = vmatpush1.bf16.xpose.msra.mxu0 0
    %1326 = vmatprep.subr.bf16.mxu0 0
    %1327 = vmatpush1.bf16.xpose.msra.mxu0 0
    %1328 = vmatprep.subr.bf16.mxu0 0
    %1329 = vmatpush1.bf16.xpose.msra.mxu0 0
    %1330 = vmatprep.subr.bf16.mxu0 0
    %1331 = vmatpush1.bf16.xpose.msra.mxu0 0
    %1332 = vmatprep.subr.bf16.mxu0 0
    %1333 = vmatpush1.bf16.xpose.msra.mxu0 0
    %1334 = vmatprep.subr.bf16.mxu0 0
    %1335 = vmatpush1.bf16.xpose.msra.mxu0 0
    %1336 = vmatprep.subr.bf16.mxu0 0
    %1337 = vmatpush1.bf16.xpose.msra.mxu0 0
    %1338 = vmatprep.subr.bf16.mxu0 0
    %1339 = vmatpush1.bf16.xpose.msra.mxu0 0
    %1340 = vmatprep.subr.bf16.mxu0 0
    %1341 = vmatpush1.bf16.xpose.msra.mxu0 0
    %1342 = vmatprep.subr.bf16.mxu0 0
    %1343 = vmatpush1.bf16.xpose.msra.mxu0 0
    %1344 = vmatprep.subr.bf16.mxu0 0
    %1345 = vmatpush1.bf16.xpose.msra.mxu0 0
    %1346 = vmatprep.subr.bf16.mxu0 0
    %1347 = vmatpush1.bf16.xpose.msra.mxu0 0
    %1348 = vmatprep.subr.bf16.mxu0 0
    %1349 = vmatpush1.bf16.xpose.msra.mxu0 0
    %1350 = vmatprep.subr.bf16.mxu0 0
    %1351 = vmatpush1.bf16.xpose.msra.mxu0 0
    %1352 = vmatprep.subr.bf16.mxu0 0
    %1353 = vmatpush1.bf16.xpose.msra.mxu0 0
    %1354 = vmatprep.mubr.bf16.mxu0 0
    %1355 = vmatmul.mubr.bf16.gmra.mrb[0].mxu0 %v1317
    %v1356 = vpop.f32.mrb[0].mxu0
    %v1357 = vadd.f32 %v463, %v1356
    %v1358 = vpop.f32.mrb[0].mxu0
    %v1359 = vpop.f32.mrb[0].mxu0
    %v1360 = vpop.f32.mrb[0].mxu0
    %1361 = vdwg.mxu0
    %1362 = vrot.lane.b32.xlu0 %v453, 32
    %v1363 = vpop.permute.xlu0 %1362
    %1364 = vrot.lane.b32.xlu0 %v455, 32
    %v1365 = vpop.permute.xlu0 %1364
    %v1367 = vsel %vm470, %v1363, 0
    %v1370 = vsel %vm470, %v1365, 0
    %1372 = vmatprep.subr.bf16.mxu0 0
    %1373 = vmatpush1.bf16.xpose.msra.mxu0 %v1370
    %1374 = vmatprep.subr.bf16.mxu0 0
    %1375 = vmatpush1.bf16.xpose.msra.mxu0 0
    %1376 = vmatprep.subr.bf16.mxu0 0
    %1377 = vmatpush1.bf16.xpose.msra.mxu0 0
    %1378 = vmatprep.subr.bf16.mxu0 0
    %1379 = vmatpush1.bf16.xpose.msra.mxu0 0
    %1380 = vmatprep.subr.bf16.mxu0 0
    %1381 = vmatpush1.bf16.xpose.msra.mxu0 0
    %1382 = vmatprep.subr.bf16.mxu0 0
    %1383 = vmatpush1.bf16.xpose.msra.mxu0 0
    %1384 = vmatprep.subr.bf16.mxu0 0
    %1385 = vmatpush1.bf16.xpose.msra.mxu0 0
    %1386 = vmatprep.subr.bf16.mxu0 0
    %1387 = vmatpush1.bf16.xpose.msra.mxu0 0
    %1388 = vmatprep.subr.bf16.mxu0 0
    %1389 = vmatpush1.bf16.xpose.msra.mxu0 0
    %1390 = vmatprep.subr.bf16.mxu0 0
    %1391 = vmatpush1.bf16.xpose.msra.mxu0 0
    %1392 = vmatprep.subr.bf16.mxu0 0
    %1393 = vmatpush1.bf16.xpose.msra.mxu0 0
    %1394 = vmatprep.subr.bf16.mxu0 0
    %1395 = vmatpush1.bf16.xpose.msra.mxu0 0
    %1396 = vmatprep.subr.bf16.mxu0 0
    %1397 = vmatpush1.bf16.xpose.msra.mxu0 0
    %1398 = vmatprep.subr.bf16.mxu0 0
    %1399 = vmatpush1.bf16.xpose.msra.mxu0 0
    %1400 = vmatprep.subr.bf16.mxu0 0
    %1401 = vmatpush1.bf16.xpose.msra.mxu0 0
    %1402 = vmatprep.subr.bf16.mxu0 0
    %1403 = vmatpush1.bf16.xpose.msra.mxu0 0
    %1404 = vmatprep.mubr.bf16.mxu0 0
    %1405 = vmatmul.mubr.bf16.gmra.mrb[0].mxu0 %v1367
    %v1406 = vpop.f32.mrb[0].mxu0
    %v1407 = vadd.f32 %v467, %v1406
    %v1408 = vpop.f32.mrb[0].mxu0
    %v1409 = vpop.f32.mrb[0].mxu0
    %v1410 = vpop.f32.mrb[0].mxu0
    %1411 = vdwg.mxu0
    %v1412 = vsel %vm563, %v1357, -inf
    %1413 = vmax.xlane.f32.xlu0 %v1412
    %v1414 = vpop.xlane.xlu0 %1413
    %v1415 = vsel %vm563, %v1407, -inf
    %1416 = vmax.xlane.f32.xlu0 %v1415
    %v1417 = vpop.xlane.xlu0 %1416
    %v1418 = vsub.f32 %v1357, %v1414
    %v1419 = vsub.f32 %v1407, %v1417
    %v1420 = vmul.f32 %v1418, 1.442695
    %v1421 = vpow.pop %v1420
    %v1422 = vmul.f32 %v1419, 1.442695
    %v1423 = vpow.pop %v1422
    %v1424 = vsel %vm563, %v1421, 0.0
    %1425 = vadd.xlane.f32.xlu0 %v1424
    %v1426 = vpop.xlane.xlu0 %1425
    %v1427 = vsel %vm563, %v1423, 0.0
    %1428 = vadd.xlane.f32.xlu0 %v1427
    %v1429 = vpop.xlane.xlu0 %1428
    %v1430 = vrcp.pop %v1426
    %v1431 = vrcp.pop %v1429
    %v1432 = vmul.f32 %v1421, %v1430
    %v1433 = vmul.f32 %v1423, %v1431
    %v1434 = vpack.c.bf16 %v1432, %v1432
    %v1435 = vpack.c.bf16 %v1433, %v1433
    %1436 = vrot.lane.b32.xlu0 %v456, 32
    %v1437 = vpop.permute.xlu0 %1436
    %v1439 = vsel %vm563, %v1434, 0
    %v1442 = vsel %vm591, %v1437, 0
    %1444 = vmatprep.subr.bf16.mxu0 0
    %1445 = vmatpush1.bf16.msra.mxu0 %v1442
    %1446 = vmatprep.subr.bf16.mxu0 0
    %1447 = vmatpush1.bf16.msra.mxu0 0
    %1448 = vmatprep.subr.bf16.mxu0 0
    %1449 = vmatpush1.bf16.msra.mxu0 0
    %1450 = vmatprep.subr.bf16.mxu0 0
    %1451 = vmatpush1.bf16.msra.mxu0 0
    %1452 = vmatprep.subr.bf16.mxu0 0
    %1453 = vmatpush1.bf16.msra.mxu0 0
    %1454 = vmatprep.subr.bf16.mxu0 0
    %1455 = vmatpush1.bf16.msra.mxu0 0
    %1456 = vmatprep.subr.bf16.mxu0 0
    %1457 = vmatpush1.bf16.msra.mxu0 0
    %1458 = vmatprep.subr.bf16.mxu0 0
    %1459 = vmatpush1.bf16.msra.mxu0 0
    %1460 = vmatprep.subr.bf16.mxu0 0
    %1461 = vmatpush1.bf16.msra.mxu0 0
    %1462 = vmatprep.subr.bf16.mxu0 0
    %1463 = vmatpush1.bf16.msra.mxu0 0
    %1464 = vmatprep.subr.bf16.mxu0 0
    %1465 = vmatpush1.bf16.msra.mxu0 0
    %1466 = vmatprep.subr.bf16.mxu0 0
    %1467 = vmatpush1.bf16.msra.mxu0 0
    %1468 = vmatprep.subr.bf16.mxu0 0
    %1469 = vmatpush1.bf16.msra.mxu0 0
    %1470 = vmatprep.subr.bf16.mxu0 0
    %1471 = vmatpush1.bf16.msra.mxu0 0
    %1472 = vmatprep.subr.bf16.mxu0 0
    %1473 = vmatpush1.bf16.msra.mxu0 0
    %1474 = vmatprep.subr.bf16.mxu0 0
    %1475 = vmatpush1.bf16.msra.mxu0 0
    %1476 = vmatprep.mubr.bf16.mxu0 0
    %1477 = vmatmul.mubr.bf16.gmra.mrb[0].mxu0 %v1439
    %v1478 = vpop.f32.mrb[0].mxu0
    %v1479 = vadd.f32 0.0, %v1478
    %v1480 = vpop.f32.mrb[0].mxu0
    %v1481 = vpop.f32.mrb[0].mxu0
    %v1482 = vpop.f32.mrb[0].mxu0
    %1483 = vdwg.mxu0
    %1484 = vrot.lane.b32.xlu0 %v457, 32
    %v1485 = vpop.permute.xlu0 %1484
    %v1487 = vsel %vm563, %v1435, 0
    %v1490 = vsel %vm591, %v1485, 0
    %1492 = vmatprep.subr.bf16.mxu0 0
    %1493 = vmatpush1.bf16.msra.mxu0 %v1490
    %1494 = vmatprep.subr.bf16.mxu0 0
    %1495 = vmatpush1.bf16.msra.mxu0 0
    %1496 = vmatprep.subr.bf16.mxu0 0
    %1497 = vmatpush1.bf16.msra.mxu0 0
    %1498 = vmatprep.subr.bf16.mxu0 0
    %1499 = vmatpush1.bf16.msra.mxu0 0
    %1500 = vmatprep.subr.bf16.mxu0 0
    %1501 = vmatpush1.bf16.msra.mxu0 0
    %1502 = vmatprep.subr.bf16.mxu0 0
    %1503 = vmatpush1.bf16.msra.mxu0 0
    %1504 = vmatprep.subr.bf16.mxu0 0
    %1505 = vmatpush1.bf16.msra.mxu0 0
    %1506 = vmatprep.subr.bf16.mxu0 0
    %1507 = vmatpush1.bf16.msra.mxu0 0
    %1508 = vmatprep.subr.bf16.mxu0 0
    %1509 = vmatpush1.bf16.msra.mxu0 0
    %1510 = vmatprep.subr.bf16.mxu0 0
    %1511 = vmatpush1.bf16.msra.mxu0 0
    %1512 = vmatprep.subr.bf16.mxu0 0
    %1513 = vmatpush1.bf16.msra.mxu0 0
    %1514 = vmatprep.subr.bf16.mxu0 0
    %1515 = vmatpush1.bf16.msra.mxu0 0
    %1516 = vmatprep.subr.bf16.mxu0 0
    %1517 = vmatpush1.bf16.msra.mxu0 0
    %1518 = vmatprep.subr.bf16.mxu0 0
    %1519 = vmatpush1.bf16.msra.mxu0 0
    %1520 = vmatprep.subr.bf16.mxu0 0
    %1521 = vmatpush1.bf16.msra.mxu0 0
    %1522 = vmatprep.subr.bf16.mxu0 0
    %1523 = vmatpush1.bf16.msra.mxu0 0
    %1524 = vmatprep.mubr.bf16.mxu0 0
    %1525 = vmatmul.mubr.bf16.gmra.mrb[0].mxu0 %v1487
    %v1526 = vpop.f32.mrb[0].mxu0
    %v1527 = vadd.f32 0.0, %v1526
    %v1528 = vpop.f32.mrb[0].mxu0
    %v1529 = vpop.f32.mrb[0].mxu0
    %v1530 = vpop.f32.mrb[0].mxu0
    %1531 = vdwg.mxu0
    %v1532 = vpack.c.bf16 %v1527, %v1479
    %v1533 = vld [vmem:[#allocation10 + $0x30] sm:$0xf]
    %v1534 = vld [vmem:[#allocation10 + $0x34] sm:$0xf]
    %v1535 = vld [vmem:[#allocation10 + $0x38] sm:$0xf]
    %v1536 = vld [vmem:[#allocation10 + $0x3c] sm:$0xf]
    %v1541 = vunpack.c.l.b16 %v1533
    %v1542 = vunpack.c.l.b16 %v1534
    %v1543 = vunpack.c.l.b16 %v1535
    %v1544 = vunpack.c.l.b16 %v1536
    %v1545 = vpack.c.b16 %v1542, %v1541
    %v1546 = vpack.c.b16 %v1544, %v1543
    %v1550 = vsel %vm470, %v1532, 0
    %1552 = vmatprep.subr.bf16.mxu0 0
    %1553 = vmatpush1.bf16.msra.mxu0 %v1545
    %1554 = vmatprep.subr.bf16.mxu0 0
    %1555 = vmatpush1.bf16.msra.mxu0 %v1546
    %1556 = vmatprep.subr.bf16.mxu0 0
    %1557 = vmatpush1.bf16.msra.mxu0 0
    %1558 = vmatprep.subr.bf16.mxu0 0
    %1559 = vmatpush1.bf16.msra.mxu0 0
    %1560 = vmatprep.subr.bf16.mxu0 0
    %1561 = vmatpush1.bf16.msra.mxu0 0
    %1562 = vmatprep.subr.bf16.mxu0 0
    %1563 = vmatpush1.bf16.msra.mxu0 0
    %1564 = vmatprep.subr.bf16.mxu0 0
    %1565 = vmatpush1.bf16.msra.mxu0 0
    %1566 = vmatprep.subr.bf16.mxu0 0
    %1567 = vmatpush1.bf16.msra.mxu0 0
    %1568 = vmatprep.subr.bf16.mxu0 0
    %1569 = vmatpush1.bf16.msra.mxu0 0
    %1570 = vmatprep.subr.bf16.mxu0 0
    %1571 = vmatpush1.bf16.msra.mxu0 0
    %1572 = vmatprep.subr.bf16.mxu0 0
    %1573 = vmatpush1.bf16.msra.mxu0 0
    %1574 = vmatprep.subr.bf16.mxu0 0
    %1575 = vmatpush1.bf16.msra.mxu0 0
    %1576 = vmatprep.subr.bf16.mxu0 0
    %1577 = vmatpush1.bf16.msra.mxu0 0
    %1578 = vmatprep.subr.bf16.mxu0 0
    %1579 = vmatpush1.bf16.msra.mxu0 0
    %1580 = vmatprep.subr.bf16.mxu0 0
    %1581 = vmatpush1.bf16.msra.mxu0 0
    %1582 = vmatprep.subr.bf16.mxu0 0
    %1583 = vmatpush1.bf16.msra.mxu0 0
    %1584 = vmatprep.mubr.bf16.mxu0 0
    %1585 = vmatmul.mubr.bf16.gmra.mrb[0].mxu0 %v1550
    %v1586 = vpop.f32.mrb[0].mxu0
    %v1587 = vadd.f32 0.0, %v1586
    %v1588 = vpop.f32.mrb[0].mxu0
    %v1589 = vpop.f32.mrb[0].mxu0
    %v1590 = vadd.f32 0.0, %v1589
    %v1591 = vpop.f32.mrb[0].mxu0
    %1592 = vdwg.mxu0
    %v1593 = vadd.f32 %v1310, %v1587
    %v1594 = vadd.f32 %v1311, %v1590
    %v1595 = vld [vmem:[%s9] sm:$0x1]
    %v1597 = vlaneseq
    %v1598 = vshrl.u32 %v1597, 7
    %v1599 = vsub.s32 0, %v1598
    %v1600 = vrot.slane %v1595, %v1599
    %v1602 = vadd.f32 %v1593, %v1600
    %v1603 = vadd.f32 %v1594, %v1600
    %1604 = vst [vmem:[#allocation11] sm:$0xff] %v1602
    %1605 = vst [vmem:[#allocation11 + $0x8] sm:$0xff] %v1603
    // Predicated region
    $region62: #{tpu_custom_call.1} parent=1 // pred_check
      _
    $region63: #{tpu_custom_call.1} parent=1 // pred_check_branch
      %1607 = sbr.rel (0) target = $region65
    $region64: #{tpu_custom_call.1} parent=1 // pred_region
      %s1609 = ssub.s32 256, 256
      %1610 = vsyncadd [#allocation4], %s1609
      %s1611 = sshll.u32 [#allocation11], 4
      %s1612 = int_to_ptr.vmem [resolvable:$true] %s1611
      %1617 = dma.vmem_to_hbm [thread:$0]  %s1612, 256, %s10, [#allocation4], 128, 128, 8
    $region65: #{tpu_custom_call.1} parent=1 // pred_fallthru
      _
    // Predicated region
    $region66: #{tpu_custom_call.1} parent=1 // pred_check
      _
    $region67: #{tpu_custom_call.1} parent=1 // pred_check_branch
      %1619 = sbr.rel (0) target = $region69
    $region68: #{tpu_custom_call.1} parent=1 // pred_region
      %1620 = dma.done [#allocation4], 256
    $region69: #{tpu_custom_call.1} parent=1 // pred_fallthru
      _
    %1621 = vsyncpa [#allocation3], 1
    %1622 = vsyncpa [#allocation6], 1
    %1623 = vsyncpa [#allocation9], 1
    %1624 = vsyncpa [#allocation4], 1

</llo_original>
